<compile_context>
chip_gen: v7x
topology: tpu7x:2x2x1
jax: 0.10.0
libtpu: 0.0.40
codegen_flags: <defaults>
</compile_context>

<pallas_src>
import jax
import jax.numpy as jnp
from jax.experimental import pallas as pl
from jax.experimental.pallas import tpu as pltpu


def _round_up(x, m):
    return ((x + m - 1) // m) * m


def qnn1_kernel(bo_ref,                                           # SMEM (1,1)
                t_ref, w1t_ref, b1e_ref, w2_ref, b2_ref, wo_ref,  # VMEM
                out_ref):
    tn = t_ref.shape[1]                                # lane tile (static)
    t = t_ref[...]                                     # (1, TN)  batch on lanes

    # Fuse the (+t) and (-t) branches along the lane (batch) axis.
    t2 = jnp.concatenate([t, -t], axis=1)              # (1, 2*TN)

    # Lin_1 as a K=1 outer product on the (idle) MXU; In1 term already folded
    # into b1_eff by the wrapper.
    l1 = jnp.dot(w1t_ref[...], t2,
                 preferred_element_type=jnp.float32) + b1e_ref[...]
    h1 = jnp.sin(l1)                                   # (D, 2*TN)

    # Lin_2: one MXU matmul covers both branches.
    l2 = jnp.dot(w2_ref[...], h1,
                 preferred_element_type=jnp.float32) + b2_ref[...]
    h2 = jnp.sin(l2)                                   # (D, 2*TN)

    # out = Linear(D, 1): (1,D)@(D,2*TN) on the MXU over the fused slab, then
    # fold the +/- halves and add the bias. Lane-dense (1, TN) store.
    r = jnp.dot(wo_ref[...], h2,
                preferred_element_type=jnp.float32)    # (1, 2*TN)
    out_ref[...] = r[:, :tn] + r[:, tn:] + bo_ref[0, 0]


def _pick_tile(n, d, tile_n):
    """Lane tile (multiple of 128) and padded batch length."""
    if tile_n is None:
        tile_n = 4096 if d <= 64 else 2048
    tile_n = max(128, _round_up(tile_n, 128))          # force 128-lane multiple
    # Cap the tile so ~4 live (D, 2*TN) f32 temporaries fit in ~16 MiB
    # (safe for v5e's 16 MiB default scoped VMEM and v7x's 64 MiB physical).
    temp_budget = 16 * 1024 * 1024
    max_tn = max(128, ((temp_budget // (32 * d)) // 128) * 128)
    tile_n = min(tile_n, max_tn)

    n128 = _round_up(max(n, 1), 128)
    if n128 <= 128:
        tn = 128
    else:
        # Guarantee >= 2 grid tiles so the "parallel" batch axis splits across
        # both TensorCores on v7x.
        half = _round_up(-(-n128 // 2), 128)
        tn = min(tile_n, half)
    n_pad = _round_up(max(n, 1), tn)
    return tn, n_pad


def _vmem_limit(d, tn):
    weight_bytes = (d * d + 4 * d) * 4 * 2       # resident weights (2x-buffered)
    io_bytes = 32 * tn                           # t + out tiles, double-buffered
    temp_bytes = 4 * d * (2 * tn) * 4            # live f32 temporaries
    est = weight_bytes + io_bytes + temp_bytes + (8 << 20)
    return int(min(max(est, 16 << 20), 48 << 20))


def qnn1_forward(t, params, *, tile_n=None):
    """t: (N, 1) float32. Returns (out (N, 1), In1 (N, 1))."""
    n = t.shape[0]
    d = params["w2"].shape[0]

    tn, n_pad = _pick_tile(n, d, tile_n)
    num_tiles = n_pad // tn

    # In1 = Ein(1) is one scalar per call: fold it into Lin_1's bias in the
    # wrapper; the kernel never touches Ein or the (D,2) lane-sparse block.
    in1_val = params["ein_w"][0, 0] + params["ein_b"][0, 0]
    w1 = params["w1"]                                    # (D, 2) Lin_1.weight
    w1_t = w1[:, 0:1]                                    # (D, 1) coeff of t
    b1_eff = in1_val * w1[:, 1:2] + params["b1"]         # (D, 1) fused In1 term
    wo_row = params["wo"].reshape(1, d)                  # (1, D) out.weight

    t_row = jnp.pad(t.reshape(-1).astype(jnp.float32),
                    (0, n_pad - n)).reshape(1, n_pad)    # lane-dense input

    smem = pl.BlockSpec(memory_space=pltpu.MemorySpace.SMEM)

    out_row = pl.pallas_call(
        qnn1_kernel,
        out_shape=jax.ShapeDtypeStruct((1, n_pad), jnp.float32),
        grid=(num_tiles,),
        in_specs=[
            smem,                                           # out bias (1,1)
            pl.BlockSpec((1, tn), lambda i: (0, i)),        # t        (1, N_pad)
            pl.BlockSpec((d, 1), lambda i: (0, 0)),         # w1_t
            pl.BlockSpec((d, 1), lambda i: (0, 0)),         # b1_eff
            pl.BlockSpec((d, d), lambda i: (0, 0)),         # Lin_2.weight
            pl.BlockSpec((d, 1), lambda i: (0, 0)),         # Lin_2.bias
            pl.BlockSpec((1, d), lambda i: (0, 0)),         # out.weight row
        ],
        out_specs=pl.BlockSpec((1, tn), lambda i: (0, i)),  # lane-dense output
        compiler_params=pltpu.CompilerParams(
            dimension_semantics=("parallel",),
            vmem_limit_bytes=_vmem_limit(d, tn)),
    )(params["bo"], t_row, w1_t, b1_eff, params["w2"], params["b2"], wo_row)

    out = out_row[0, :n].reshape(n, 1)

    # In1 = Ein(ones_like(t)) is a per-call constant; materialize it in the
    # wrapper (no masked (N,1) stores from the kernel).
    in1 = jnp.full((n, 1), in1_val, dtype=jnp.float32)
    return out, in1


qnn1_forward_jit = jax.jit(qnn1_forward, static_argnames=("tile_n",))


def init_params(key, d_hid):
    """Deterministic synthetic parameters matching the torch module's shapes."""
    ks = jax.random.split(key, 8)

    def u(k, shape, fan_in):
        bound = 1.0 / jnp.sqrt(jnp.float32(fan_in))
        return jax.random.uniform(k, shape, jnp.float32,
                                  minval=-bound, maxval=bound)

    return {
        "ein_w": u(ks[0], (1, 1), 1),              # Ein.weight (1,1)
        "ein_b": u(ks[1], (1, 1), 1),              # Ein.bias
        "w1":    u(ks[2], (d_hid, 2), 2),          # Lin_1.weight (D,2)
        "b1":    u(ks[3], (d_hid, 1), 2),          # Lin_1.bias
        "w2":    u(ks[4], (d_hid, d_hid), d_hid),  # Lin_2.weight (D,D)
        "b2":    u(ks[5], (d_hid, 1), d_hid),      # Lin_2.bias
        "wo":    u(ks[6], (d_hid, 1), d_hid),      # out.weight.T (D,1)
        "bo":    u(ks[7], (1, 1), d_hid),          # out.bias
    }


def qnn1_reference(t, p):
    """Pure-JAX reference mirroring the torch forward (for verification)."""
    hi = jax.lax.Precision.HIGHEST
    in1 = jnp.ones_like(t) * p["ein_w"][0, 0] + p["ein_b"][0, 0]
    l1 = jnp.dot(jnp.concatenate([t, in1], 1), p["w1"].T, precision=hi) + p["b1"][:, 0]
    l1p = jnp.dot(jnp.concatenate([-t, in1], 1), p["w1"].T, precision=hi) + p["b1"][:, 0]
    h1, h1p = jnp.sin(l1), jnp.sin(l1p)
    h2 = jnp.sin(jnp.dot(h1, p["w2"].T, precision=hi) + p["b2"][:, 0])
    h2p = jnp.sin(jnp.dot(h1p, p["w2"].T, precision=hi) + p["b2"][:, 0])
    out = jnp.dot(h2 + h2p, p["wo"], precision=hi) + p["bo"][0, 0]
    return out, in1


if __name__ == "__main__":
    D_HID = 32
    key = jax.random.PRNGKey(0)
    k_t, k_t2, k_p = jax.random.split(key, 3)
    params = init_params(k_p, D_HID)

    # Small batch (single grid tile).
    N = 8
    t = jax.random.normal(k_t, (N, 1), dtype=jnp.float32)
    out, in1 = qnn1_forward_jit(t, params)
    jax.block_until_ready((out, in1))
    out_ref, in1_ref = qnn1_reference(t, params)
    assert out.shape == (N, 1) and in1.shape == (N, 1)
    assert jnp.allclose(out, out_ref, atol=1e-4, rtol=1e-4)
    assert jnp.allclose(in1, in1_ref, atol=1e-4, rtol=1e-4)

    # Larger batch: default tiling gives >= 2 grid tiles (v7x dual-TC path);
    # explicit tile_n=128 exercises a 3-tile grid with padding.
    N2 = 300
    t2 = jax.random.normal(k_t2, (N2, 1), dtype=jnp.float32)
    out2_ref, in12_ref = qnn1_reference(t2, params)
    for tile in (None, 128):
        out2, in12 = qnn1_forward_jit(t2, params, tile_n=tile)
        jax.block_until_ready((out2, in12))
        assert out2.shape == (N2, 1) and in12.shape == (N2, 1)
        assert jnp.allclose(out2, out2_ref, atol=1e-4, rtol=1e-4)
        assert jnp.allclose(in12, in12_ref, atol=1e-4, rtol=1e-4)

    print("KERNEL_OK")
</pallas_src>

<mosaic_0001>
module attributes {stable_mosaic.version = 11 : i64} {
  func.func @qnn1_kernel(%arg0: i32, %arg1: memref<1x1xf32, #tpu.memory_space<smem>>, %arg2: memref<1x128xf32, #tpu.memory_space<vmem>>, %arg3: memref<32x1xf32, #tpu.memory_space<vmem>>, %arg4: memref<32x1xf32, #tpu.memory_space<vmem>>, %arg5: memref<32x32xf32, #tpu.memory_space<vmem>>, %arg6: memref<32x1xf32, #tpu.memory_space<vmem>>, %arg7: memref<1x32xf32, #tpu.memory_space<vmem>>, %arg8: memref<1x128xf32, #tpu.memory_space<vmem>>) attributes {dimension_semantics = [#tpu.dimension_semantics<parallel>], iteration_bounds = array<i64: 1>, scalar_prefetch = 0 : i64, scratch_operands = 0 : i64, tpu.core_type = #tpu.core_type<tc>, window_params = [{transform_indices = @transform_0, window_bounds = array<i64: 1, 1>}, {transform_indices = @transform_1, window_bounds = array<i64: 1, 128>}, {pipeline_mode = #tpu.pipeline_mode<synchronous>, transform_indices = @transform_2, window_bounds = array<i64: 32, 1>}, {pipeline_mode = #tpu.pipeline_mode<synchronous>, transform_indices = @transform_3, window_bounds = array<i64: 32, 1>}, {pipeline_mode = #tpu.pipeline_mode<synchronous>, transform_indices = @transform_4, window_bounds = array<i64: 32, 32>}, {pipeline_mode = #tpu.pipeline_mode<synchronous>, transform_indices = @transform_5, window_bounds = array<i64: 32, 1>}, {pipeline_mode = #tpu.pipeline_mode<synchronous>, transform_indices = @transform_6, window_bounds = array<i64: 1, 32>}, {transform_indices = @transform_7, window_bounds = array<i64: 1, 128>}]} {
    %c0 = arith.constant 0 : index
    %c0_0 = arith.constant 0 : index
    %0 = vector.load %arg2[%c0, %c0_0] : memref<1x128xf32, #tpu.memory_space<vmem>>, vector<1x128xf32>
    %cst = arith.constant 0.000000e+00 : f32
    %1 = vector.broadcast %cst : f32 to vector<1x128xf32>
    %2 = arith.subf %1, %0 : vector<1x128xf32>
    %3 = tpu.concatenate %0, %2 in 1 : vector<1x128xf32>, vector<1x128xf32> -> vector<1x256xf32>
    %c0_1 = arith.constant 0 : index
    %c0_2 = arith.constant 0 : index
    %4 = vector.load %arg3[%c0_1, %c0_2] : memref<32x1xf32, #tpu.memory_space<vmem>>, vector<32x1xf32>
    %cst_3 = arith.constant dense<0.000000e+00> : vector<32x256xf32>
    %5 = tpu.matmul %4, %3, %cst_3 {dimension_numbers = #tpu.dot_dimension_numbers<[1], [0], [0], [1], [0, 0, 1, 1], [], []>} : vector<32x1xf32>, vector<1x256xf32>, vector<32x256xf32> -> vector<32x256xf32>
    %c0_4 = arith.constant 0 : index
    %c0_5 = arith.constant 0 : index
    %6 = vector.load %arg4[%c0_4, %c0_5] : memref<32x1xf32, #tpu.memory_space<vmem>>, vector<32x1xf32>
    %7 = vector.broadcast %6 : vector<32x1xf32> to vector<32x256xf32>
    %8 = arith.addf %5, %7 : vector<32x256xf32>
    %9 = math.sin %8 : vector<32x256xf32>
    %c0_6 = arith.constant 0 : index
    %c0_7 = arith.constant 0 : index
    %10 = vector.load %arg5[%c0_6, %c0_7] : memref<32x32xf32, #tpu.memory_space<vmem>>, vector<32x32xf32>
    %cst_8 = arith.constant dense<0.000000e+00> : vector<32x256xf32>
    %11 = tpu.matmul %10, %9, %cst_8 {dimension_numbers = #tpu.dot_dimension_numbers<[1], [0], [0], [1], [0, 0, 1, 1], [], []>} : vector<32x32xf32>, vector<32x256xf32>, vector<32x256xf32> -> vector<32x256xf32>
    %c0_9 = arith.constant 0 : index
    %c0_10 = arith.constant 0 : index
    %12 = vector.load %arg6[%c0_9, %c0_10] : memref<32x1xf32, #tpu.memory_space<vmem>>, vector<32x1xf32>
    %13 = vector.broadcast %12 : vector<32x1xf32> to vector<32x256xf32>
    %14 = arith.addf %11, %13 : vector<32x256xf32>
    %15 = math.sin %14 : vector<32x256xf32>
    %c0_11 = arith.constant 0 : index
    %c0_12 = arith.constant 0 : index
    %16 = vector.load %arg7[%c0_11, %c0_12] : memref<1x32xf32, #tpu.memory_space<vmem>>, vector<1x32xf32>
    %cst_13 = arith.constant dense<0.000000e+00> : vector<1x256xf32>
    %17 = tpu.matmul %16, %15, %cst_13 {dimension_numbers = #tpu.dot_dimension_numbers<[1], [0], [0], [1], [0, 0, 1, 1], [], []>} : vector<1x32xf32>, vector<32x256xf32>, vector<1x256xf32> -> vector<1x256xf32>
    %18 = vector.extract_strided_slice %17 {offsets = [0, 0], sizes = [1, 128], strides = [1, 1]} : vector<1x256xf32> to vector<1x128xf32>
    %19 = vector.extract_strided_slice %17 {offsets = [0, 128], sizes = [1, 128], strides = [1, 1]} : vector<1x256xf32> to vector<1x128xf32>
    %20 = arith.addf %18, %19 : vector<1x128xf32>
    %c0_14 = arith.constant 0 : index
    %c0_15 = arith.constant 0 : index
    %21 = memref.load %arg1[%c0_14, %c0_15] : memref<1x1xf32, #tpu.memory_space<smem>>
    %22 = vector.broadcast %21 : f32 to vector<1x128xf32>
    %23 = arith.addf %20, %22 : vector<1x128xf32>
    %c0_16 = arith.constant 0 : index
    %c0_17 = arith.constant 0 : index
    %24 = vector.load %arg8[%c0_16, %c0_17] : memref<1x128xf32, #tpu.memory_space<vmem>>, vector<1x128xf32>
    tpu.vector_store %arg8[%c0_16, %c0_17], %23 {strides = array<i32>} : memref<1x128xf32, #tpu.memory_space<vmem>>, vector<1x128xf32>,
    return
  }
  func.func @transform_0(%arg0: i32) -> (i32, i32) {
    %c0_i32 = arith.constant 0 : i32
    %c0_i32_0 = arith.constant 0 : i32
    %c0_i32_1 = arith.constant 0 : i32
    return %c0_i32, %c0_i32_0 : i32, i32
  }
  func.func @transform_1(%arg0: i32) -> (i32, i32) {
    %c0_i32 = arith.constant 0 : i32
    %c0_i32_0 = arith.constant 0 : i32
    return %c0_i32, %arg0 : i32, i32
  }
  func.func @transform_2(%arg0: i32) -> (i32, i32) {
    %c0_i32 = arith.constant 0 : i32
    %c0_i32_0 = arith.constant 0 : i32
    %c0_i32_1 = arith.constant 0 : i32
    return %c0_i32, %c0_i32_0 : i32, i32
  }
  func.func @transform_3(%arg0: i32) -> (i32, i32) {
    %c0_i32 = arith.constant 0 : i32
    %c0_i32_0 = arith.constant 0 : i32
    %c0_i32_1 = arith.constant 0 : i32
    return %c0_i32, %c0_i32_0 : i32, i32
  }
  func.func @transform_4(%arg0: i32) -> (i32, i32) {
    %c0_i32 = arith.constant 0 : i32
    %c0_i32_0 = arith.constant 0 : i32
    %c0_i32_1 = arith.constant 0 : i32
    return %c0_i32, %c0_i32_0 : i32, i32
  }
  func.func @transform_5(%arg0: i32) -> (i32, i32) {
    %c0_i32 = arith.constant 0 : i32
    %c0_i32_0 = arith.constant 0 : i32
    %c0_i32_1 = arith.constant 0 : i32
    return %c0_i32, %c0_i32_0 : i32, i32
  }
  func.func @transform_6(%arg0: i32) -> (i32, i32) {
    %c0_i32 = arith.constant 0 : i32
    %c0_i32_0 = arith.constant 0 : i32
    %c0_i32_1 = arith.constant 0 : i32
    return %c0_i32, %c0_i32_0 : i32, i32
  }
  func.func @transform_7(%arg0: i32) -> (i32, i32) {
    %c0_i32 = arith.constant 0 : i32
    %c0_i32_0 = arith.constant 0 : i32
    return %c0_i32, %arg0 : i32, i32
  }
}

</mosaic_0001>

<llo_original>
// kernel: qnn1_forward.1
$region0: #{qnn1_forward.1}
  #allocation0 [shape = 'u32[]', space=smem, size = 0x4, offset = 0x4, fixed_abs, tag = 'smem constant byte address 0x4 - core index']
  #allocation1 [shape = 'u32[144,128]{1,0:T(1,128)}', space=vmem, size = 0x12000, scoped, tag = 'internal scratch']
  #allocation2 [shape = 'f32[1,1]{1,0:T(1,128)S(6)}', space=smem, size = 0x200, scoped, tag = 'scoped memory for qnn1_forward.1']
  %s0 = inlined_call_operand.<no memory space> [shape: f32[1,1], index: 0, kind: input, shape index: {}]
  %s1 = inlined_call_operand.vmem [shape: f32[1,128], index: 1, kind: input, shape index: {}]
  %s2 = inlined_call_operand.vmem [shape: f32[32,1], index: 2, kind: input, shape index: {}]
  %s3 = inlined_call_operand.vmem [shape: f32[32,1], index: 3, kind: input, shape index: {}]
  %s4 = inlined_call_operand.vmem [shape: f32[32,32], index: 4, kind: input, shape index: {}]
  %s5 = inlined_call_operand.vmem [shape: f32[32,1], index: 5, kind: input, shape index: {}]
  %s6 = inlined_call_operand.vmem [shape: f32[1,32], index: 6, kind: input, shape index: {}]
  %s7 = inlined_call_operand.vmem [shape: f32[1,128], index: 7, kind: output, shape index: {}]
  %s8 = sld [smem:[#allocation0]]
  $region38: #{qnn1_forward.1} parent=0
    _
  %s10 = ssub.s32 1, %s8
  %s11 = scalar_select 0, %s10, %s8
  %12 = sst [smem:[#allocation2]] %s0
  // Predicated region
  $region2: #{qnn1_forward.1} parent=0 // pred_check
    _
  $region3: #{qnn1_forward.1} parent=0 // pred_check_branch
    %14 = sbr.rel (0) target = $region5
  $region4: #{qnn1_forward.1} parent=0 // pred_region
    _
  $region5: #{qnn1_forward.1} parent=0 // pred_fallthru
    _
  // Predicated region
  $region6: #{qnn1_forward.1} parent=0 // pred_check
    _
  $region7: #{qnn1_forward.1} parent=0 // pred_check_branch
    %16 = sbr.rel (0) target = $region9
  $region8: #{qnn1_forward.1} parent=0 // pred_region
    _
  $region9: #{qnn1_forward.1} parent=0 // pred_fallthru
    _
  // Predicated region
  $region10: #{qnn1_forward.1} parent=0 // pred_check
    _
  $region11: #{qnn1_forward.1} parent=0 // pred_check_branch
    %18 = sbr.rel (0) target = $region13
  $region12: #{qnn1_forward.1} parent=0 // pred_region
    _
  $region13: #{qnn1_forward.1} parent=0 // pred_fallthru
    _
  // Predicated region
  $region14: #{qnn1_forward.1} parent=0 // pred_check
    _
  $region15: #{qnn1_forward.1} parent=0 // pred_check_branch
    %20 = sbr.rel (0) target = $region17
  $region16: #{qnn1_forward.1} parent=0 // pred_region
    _
  $region17: #{qnn1_forward.1} parent=0 // pred_fallthru
    _
  // Predicated region
  $region18: #{qnn1_forward.1} parent=0 // pred_check
    _
  $region19: #{qnn1_forward.1} parent=0 // pred_check_branch
    %22 = sbr.rel (0) target = $region21
  $region20: #{qnn1_forward.1} parent=0 // pred_region
    _
  $region21: #{qnn1_forward.1} parent=0 // pred_fallthru
    _
  // Predicated region
  $region22: #{qnn1_forward.1} parent=0 // pred_check
    _
  $region23: #{qnn1_forward.1} parent=0 // pred_check_branch
    %24 = sbr.rel (0) target = $region25
  $region24: #{qnn1_forward.1} parent=0 // pred_region
    _
  $region25: #{qnn1_forward.1} parent=0 // pred_fallthru
    _
  // Predicated region
  $region26: #{qnn1_forward.1} parent=0 // pred_check
    _
  $region27: #{qnn1_forward.1} parent=0 // pred_check_branch
    %26 = sbr.rel (0) target = $region29
  $region28: #{qnn1_forward.1} parent=0 // pred_region
    _
  $region29: #{qnn1_forward.1} parent=0 // pred_fallthru
    _
  %v27 = vld [vmem:[%s1] sm:$0x1]
  %v28 = vsub.f32 0.0, %v27
  %v29 = vld [vmem:[%s2] sm:$0xff]
  %v30 = vld [vmem:[%s2 + $0x8] sm:$0xff]
  %v31 = vld [vmem:[%s2 + $0x10] sm:$0xff]
  %v32 = vld [vmem:[%s2 + $0x18] sm:$0xff]
  %v33 = vld [vmem:[%s3] sm:$0xff]
  %v34 = vld [vmem:[%s3 + $0x8] sm:$0xff]
  %v35 = vld [vmem:[%s3 + $0x10] sm:$0xff]
  %v36 = vld [vmem:[%s3 + $0x18] sm:$0xff]
  %38 = vset.pattern.permute.xlu0 0
  %39 = vperm.xlu0 %38, %v33
  %v40 = vpop.permute.xlu0 %39
  %43 = vset.pattern.permute.xlu0 0
  %44 = vperm.xlu0 %43, %v34
  %v45 = vpop.permute.xlu0 %44
  %48 = vset.pattern.permute.xlu0 0
  %49 = vperm.xlu0 %48, %v35
  %v50 = vpop.permute.xlu0 %49
  %53 = vset.pattern.permute.xlu0 0
  %54 = vperm.xlu0 %53, %v36
  %v55 = vpop.permute.xlu0 %54
  %vm57 = vcmask 7168
  %v59 = vsel %vm57, %v29, 0
  %v62 = vsel %vm57, %v30, 0
  %v65 = vsel %vm57, %v31, 0
  %v68 = vsel %vm57, %v32, 0
  %vm70 = vcmask 1040384
  %v72 = vsel %vm70, %v27, 0
  %v75 = vsel %vm70, %v28, 0
  %77 = vmatprep.subr.mxu0 %v75
  %78 = vmatpush1.msra.mxu0 %v72
  %79 = vmatprep.subr.mxu0 0.0
  %80 = vmatpush1.msra.mxu0 0.0
  %81 = vmatprep.subr.mxu0 0.0
  %82 = vmatpush1.msra.mxu0 0.0
  %83 = vmatprep.subr.mxu0 0.0
  %84 = vmatpush1.msra.mxu0 0.0
  %85 = vmatprep.subr.mxu0 0.0
  %86 = vmatpush1.msra.mxu0 0.0
  %87 = vmatprep.subr.mxu0 0.0
  %88 = vmatpush1.msra.mxu0 0.0
  %89 = vmatprep.subr.mxu0 0.0
  %90 = vmatpush1.msra.mxu0 0.0
  %91 = vmatprep.subr.mxu0 0.0
  %92 = vmatpush1.msra.mxu0 0.0
  %93 = vmatprep.subr.mxu0 0.0
  %94 = vmatpush1.msra.mxu0 0.0
  %95 = vmatprep.subr.mxu0 0.0
  %96 = vmatpush1.msra.mxu0 0.0
  %97 = vmatprep.subr.mxu0 0.0
  %98 = vmatpush1.msra.mxu0 0.0
  %99 = vmatprep.subr.mxu0 0.0
  %100 = vmatpush1.msra.mxu0 0.0
  %101 = vmatprep.subr.mxu0 0.0
  %102 = vmatpush1.msra.mxu0 0.0
  %103 = vmatprep.subr.mxu0 0.0
  %104 = vmatpush1.msra.mxu0 0.0
  %105 = vmatprep.subr.mxu0 0.0
  %106 = vmatpush1.msra.mxu0 0.0
  %107 = vmatprep.subr.mxu0 0.0
  %108 = vmatpush1.msra.mxu0 0.0
  %109 = vmatprep.subr.mxu0 0.0
  %110 = vmatpush1.msra.mxu0 0.0
  %111 = vmatprep.subr.mxu0 0.0
  %112 = vmatpush1.msra.mxu0 0.0
  %113 = vmatprep.subr.mxu0 0.0
  %114 = vmatpush1.msra.mxu0 0.0
  %115 = vmatprep.subr.mxu0 0.0
  %116 = vmatpush1.msra.mxu0 0.0
  %117 = vmatprep.subr.mxu0 0.0
  %118 = vmatpush1.msra.mxu0 0.0
  %119 = vmatprep.subr.mxu0 0.0
  %120 = vmatpush1.msra.mxu0 0.0
  %121 = vmatprep.subr.mxu0 0.0
  %122 = vmatpush1.msra.mxu0 0.0
  %123 = vmatprep.subr.mxu0 0.0
  %124 = vmatpush1.msra.mxu0 0.0
  %125 = vmatprep.subr.mxu0 0.0
  %126 = vmatpush1.msra.mxu0 0.0
  %127 = vmatprep.subr.mxu0 0.0
  %128 = vmatpush1.msra.mxu0 0.0
  %129 = vmatprep.subr.mxu0 0.0
  %130 = vmatpush1.msra.mxu0 0.0
  %131 = vmatprep.subr.mxu0 0.0
  %132 = vmatpush1.msra.mxu0 0.0
  %133 = vmatprep.subr.mxu0 0.0
  %134 = vmatpush1.msra.mxu0 0.0
  %135 = vmatprep.subr.mxu0 0.0
  %136 = vmatpush1.msra.mxu0 0.0
  %137 = vmatprep.subr.mxu0 0.0
  %138 = vmatpush1.msra.mxu0 0.0
  %139 = vmatprep.subr.mxu0 0.0
  %140 = vmatpush1.msra.mxu0 0.0
  %141 = vmatprep.mubr.f32.mxu0 0.0
  %142 = vmatmul.mubr.f32.gmra.mrb[0].mxu0 %v59
  %v143 = vpop.f32.mrb[0].mxu0
  %v144 = vadd.f32 %v40, %v143
  %v145 = vpop.f32.mrb[0].mxu0
  %v146 = vadd.f32 %v40, %v145
  %147 = vmatprep.mubr.f32.mxu0 0.0
  %148 = vmatmul.mubr.f32.gmra.mrb[0].mxu0 %v62
  %v149 = vpop.f32.mrb[0].mxu0
  %v150 = vadd.f32 %v45, %v149
  %v151 = vpop.f32.mrb[0].mxu0
  %v152 = vadd.f32 %v45, %v151
  %153 = vmatprep.mubr.f32.mxu0 0.0
  %154 = vmatmul.mubr.f32.gmra.mrb[0].mxu0 %v65
  %v155 = vpop.f32.mrb[0].mxu0
  %v156 = vadd.f32 %v50, %v155
  %v157 = vpop.f32.mrb[0].mxu0
  %v158 = vadd.f32 %v50, %v157
  %159 = vmatprep.mubr.f32.mxu0 0.0
  %160 = vmatmul.mubr.f32.gmra.mrb[0].mxu0 %v68
  %v161 = vpop.f32.mrb[0].mxu0
  %v162 = vadd.f32 %v55, %v161
  %v163 = vpop.f32.mrb[0].mxu0
  %v164 = vadd.f32 %v55, %v163
  %165 = vdwg.mxu0
  %v166 = vand.u32 2147483647, %v144
  %vm167 = vcmp.le.f32.partialorder %v166, 0.7853982
  %vm168 = vcmp.lt.s32.totalorder %v144, 0
  %v169 = vand.u32 %v144, 2139095040
  %v170 = vshrl.u32 %v169, 23
  %v171 = vsub.s32 %v170, 127
  %v172 = vand.u32 2147483647, %v144
  %v173 = vand.u32 %v172, 8388607
  %v174 = vor.u32 %v173, 8388608
  %v175 = vsub.s32 0, %v174
  %v176 = vadd.s32 %v171, 1
  %vm177 = vcmp.gt.s32.totalorder %v176, 0
  %v178 = vsel %vm177, %v176, 0
  %v179 = vshrl.u32 %v178, 5
  %v180 = vand.u32 %v178, 31
  %v181 = vsub.s32 32, %v180
  %v182 = vshrl.u32 683565275, %v181
  %v183 = vshll.u32 683565275, %v180
  %v184 = vshrl.u32 2475754826, %v181
  %v185 = vor.u32 %v183, %v184
  %v186 = vshll.u32 2475754826, %v180
  %v187 = vshrl.u32 2131351028, %v181
  %v188 = vor.u32 %v186, %v187
  %v189 = vshll.u32 2131351028, %v180
  %v190 = vshrl.u32 2102212464, %v181
  %v191 = vor.u32 %v189, %v190
  %v192 = vshll.u32 2102212464, %v180
  %v193 = vshrl.u32 920167782, %v181
  %v194 = vor.u32 %v192, %v193
  %v195 = vshll.u32 920167782, %v180
  %v196 = vshrl.u32 1326507024, %v181
  %v197 = vor.u32 %v195, %v196
  %vm198 = vcmp.lt.s32.totalorder %v179, 1
  %vm199 = vcmp.lt.s32.totalorder %v179, 2
  %vm200 = vcmp.lt.s32.totalorder %v179, 3
  %vm201 = vcmp.lt.s32.totalorder %v179, 4
  %v202 = vsel %vm198, %v182, %v185
  %v203 = vsel %vm201, %v191, 2102212464
  %v204 = vsel %vm200, %v188, %v203
  %v205 = vsel %vm199, %v202, %v204
  %v206 = vsel %vm198, %v185, %v188
  %v207 = vsel %vm201, %v194, 920167782
  %v208 = vsel %vm200, %v191, %v207
  %v209 = vsel %vm199, %v206, %v208
  %v210 = vsel %vm198, %v188, %v191
  %v211 = vsel %vm201, %v197, 1326507024
  %v212 = vsel %vm200, %v194, %v211
  %v213 = vsel %vm199, %v210, %v212
  %v214 = vshll.u32 %v174, 8
  %v215 = vmul.u32.u64.compose %v214, %v213
  %v216 = vextract.low.u32 %v215
  %v217 = vextract.high.u32 %v215
  %v218 = vmul.u32.u64.compose %v214, %v209
  %v219 = vextract.low.u32 %v218
  %v220 = vextract.high.u32 %v218
  %v221 = vmul.u32 %v214, %v205
  %v222 = vadd.s32 %v217, %v219
  %vm223 = vc.u32 %v217, %v219
  %v224 = vadd.s32 %v220, 1
  %v225 = vsel %vm223, %v224, %v220
  %v226 = vadd.s32 %v221, %v225
  %v227 = vadd.s32 %v226, 536870912
  %v228 = vshrl.u32 %v227, 30
  %v229 = vshll.u32 %v228, 30
  %v230 = vsub.s32 %v226, %v229
  %vm231 = vcmp.lt.s32.totalorder %v230, 0
  %v232 = vsub.s32 0, %v230
  %v233 = vsel %vm231, %v232, %v230
  %v234 = vclz %v233
  %v235 = vsub.s32 %v234, 2
  %vm236 = vcmp.gt.s32.totalorder 0, %v235
  %v237 = vsel %vm236, 0, %v235
  %v238 = vsub.s32 32, %v237
  %v239 = vshll.u32 %v230, %v237
  %v240 = vshrl.u32 %v222, %v238
  %v241 = vor.u32 %v239, %v240
  %v242 = vsub.s32 4294967266, %v237
  %v243 = vadd.s32 %v242, 127
  %v244 = vshll.u32 %v243, 23
  %v245 = vor.u32 4788187, %v244
  %v246 = vand.u32 2147483647, %v245
  %v248 = vcvt.s32.f32 %v241
  %v249 = vmul.f32 %v248, %v246
  %v250 = vxor.u32 %v249, 2147483648
  %v251 = vsel %vm168, %v250, %v249
  %v252 = vsub.s32 4, %v228
  %v253 = vsel %vm168, %v252, %v228
  %v254 = vsel %vm167, %v144, %v251
  %v255 = vsel %vm167, 0, %v253
  %v256 = vcosq.f32.pop %v254
  %v257 = vsinq.f32.pop %v254
  %vm258 = vweird.f32 %v144
  %v259 = vadd.s32 %v255, 3
  %v260 = vand.u32 %v259, 3
  %vm261 = vcmp.lt.s32.totalorder %v260, 2
  %vm262 = vcmp.eq.s32.totalorder %v260, 0
  %v263 = vxor.u32 %v257, 2147483648
  %v264 = vsel %vm262, %v256, %v263
  %vm265 = vcmp.eq.s32.totalorder %v260, 2
  %v266 = vxor.u32 %v256, 2147483648
  %v267 = vsel %vm265, %v266, %v257
  %v268 = vsel %vm261, %v264, %v267
  %v269 = vsel %vm258, nan, %v268
  %v270 = vand.u32 2147483647, %v146
  %vm271 = vcmp.le.f32.partialorder %v270, 0.7853982
  %vm272 = vcmp.lt.s32.totalorder %v146, 0
  %v273 = vand.u32 %v146, 2139095040
  %v274 = vshrl.u32 %v273, 23
  %v275 = vsub.s32 %v274, 127
  %v276 = vand.u32 2147483647, %v146
  %v277 = vand.u32 %v276, 8388607
  %v278 = vor.u32 %v277, 8388608
  %v279 = vsub.s32 0, %v278
  %v280 = vadd.s32 %v275, 1
  %vm281 = vcmp.gt.s32.totalorder %v280, 0
  %v282 = vsel %vm281, %v280, 0
  %v283 = vshrl.u32 %v282, 5
  %v284 = vand.u32 %v282, 31
  %v285 = vsub.s32 32, %v284
  %v286 = vshrl.u32 683565275, %v285
  %v287 = vshll.u32 683565275, %v284
  %v288 = vshrl.u32 2475754826, %v285
  %v289 = vor.u32 %v287, %v288
  %v290 = vshll.u32 2475754826, %v284
  %v291 = vshrl.u32 2131351028, %v285
  %v292 = vor.u32 %v290, %v291
  %v293 = vshll.u32 2131351028, %v284
  %v294 = vshrl.u32 2102212464, %v285
  %v295 = vor.u32 %v293, %v294
  %v296 = vshll.u32 2102212464, %v284
  %v297 = vshrl.u32 920167782, %v285
  %v298 = vor.u32 %v296, %v297
  %v299 = vshll.u32 920167782, %v284
  %v300 = vshrl.u32 1326507024, %v285
  %v301 = vor.u32 %v299, %v300
  %vm302 = vcmp.lt.s32.totalorder %v283, 1
  %vm303 = vcmp.lt.s32.totalorder %v283, 2
  %vm304 = vcmp.lt.s32.totalorder %v283, 3
  %vm305 = vcmp.lt.s32.totalorder %v283, 4
  %v306 = vsel %vm302, %v286, %v289
  %v307 = vsel %vm305, %v295, 2102212464
  %v308 = vsel %vm304, %v292, %v307
  %v309 = vsel %vm303, %v306, %v308
  %v310 = vsel %vm302, %v289, %v292
  %v311 = vsel %vm305, %v298, 920167782
  %v312 = vsel %vm304, %v295, %v311
  %v313 = vsel %vm303, %v310, %v312
  %v314 = vsel %vm302, %v292, %v295
  %v315 = vsel %vm305, %v301, 1326507024
  %v316 = vsel %vm304, %v298, %v315
  %v317 = vsel %vm303, %v314, %v316
  %v318 = vshll.u32 %v278, 8
  %v319 = vmul.u32.u64.compose %v318, %v317
  %v320 = vextract.low.u32 %v319
  %v321 = vextract.high.u32 %v319
  %v322 = vmul.u32.u64.compose %v318, %v313
  %v323 = vextract.low.u32 %v322
  %v324 = vextract.high.u32 %v322
  %v325 = vmul.u32 %v318, %v309
  %v326 = vadd.s32 %v321, %v323
  %vm327 = vc.u32 %v321, %v323
  %v328 = vadd.s32 %v324, 1
  %v329 = vsel %vm327, %v328, %v324
  %v330 = vadd.s32 %v325, %v329
  %v331 = vadd.s32 %v330, 536870912
  %v332 = vshrl.u32 %v331, 30
  %v333 = vshll.u32 %v332, 30
  %v334 = vsub.s32 %v330, %v333
  %vm335 = vcmp.lt.s32.totalorder %v334, 0
  %v336 = vsub.s32 0, %v334
  %v337 = vsel %vm335, %v336, %v334
  %v338 = vclz %v337
  %v339 = vsub.s32 %v338, 2
  %vm340 = vcmp.gt.s32.totalorder 0, %v339
  %v341 = vsel %vm340, 0, %v339
  %v342 = vsub.s32 32, %v341
  %v343 = vshll.u32 %v334, %v341
  %v344 = vshrl.u32 %v326, %v342
  %v345 = vor.u32 %v343, %v344
  %v346 = vsub.s32 4294967266, %v341
  %v347 = vadd.s32 %v346, 127
  %v348 = vshll.u32 %v347, 23
  %v349 = vor.u32 4788187, %v348
  %v350 = vand.u32 2147483647, %v349
  %v352 = vcvt.s32.f32 %v345
  %v353 = vmul.f32 %v352, %v350
  %v354 = vxor.u32 %v353, 2147483648
  %v355 = vsel %vm272, %v354, %v353
  %v356 = vsub.s32 4, %v332
  %v357 = vsel %vm272, %v356, %v332
  %v358 = vsel %vm271, %v146, %v355
  %v359 = vsel %vm271, 0, %v357
  %v360 = vcosq.f32.pop %v358
  %v361 = vsinq.f32.pop %v358
  %vm362 = vweird.f32 %v146
  %v363 = vadd.s32 %v359, 3
  %v364 = vand.u32 %v363, 3
  %vm365 = vcmp.lt.s32.totalorder %v364, 2
  %vm366 = vcmp.eq.s32.totalorder %v364, 0
  %v367 = vxor.u32 %v361, 2147483648
  %v368 = vsel %vm366, %v360, %v367
  %vm369 = vcmp.eq.s32.totalorder %v364, 2
  %v370 = vxor.u32 %v360, 2147483648
  %v371 = vsel %vm369, %v370, %v361
  %v372 = vsel %vm365, %v368, %v371
  %v373 = vsel %vm362, nan, %v372
  %v374 = vand.u32 2147483647, %v150
  %vm375 = vcmp.le.f32.partialorder %v374, 0.7853982
  %vm376 = vcmp.lt.s32.totalorder %v150, 0
  %v377 = vand.u32 %v150, 2139095040
  %v378 = vshrl.u32 %v377, 23
  %v379 = vsub.s32 %v378, 127
  %v380 = vand.u32 2147483647, %v150
  %v381 = vand.u32 %v380, 8388607
  %v382 = vor.u32 %v381, 8388608
  %v383 = vsub.s32 0, %v382
  %v384 = vadd.s32 %v379, 1
  %vm385 = vcmp.gt.s32.totalorder %v384, 0
  %v386 = vsel %vm385, %v384, 0
  %v387 = vshrl.u32 %v386, 5
  %v388 = vand.u32 %v386, 31
  %v389 = vsub.s32 32, %v388
  %v390 = vshrl.u32 683565275, %v389
  %v391 = vshll.u32 683565275, %v388
  %v392 = vshrl.u32 2475754826, %v389
  %v393 = vor.u32 %v391, %v392
  %v394 = vshll.u32 2475754826, %v388
  %v395 = vshrl.u32 2131351028, %v389
  %v396 = vor.u32 %v394, %v395
  %v397 = vshll.u32 2131351028, %v388
  %v398 = vshrl.u32 2102212464, %v389
  %v399 = vor.u32 %v397, %v398
  %v400 = vshll.u32 2102212464, %v388
  %v401 = vshrl.u32 920167782, %v389
  %v402 = vor.u32 %v400, %v401
  %v403 = vshll.u32 920167782, %v388
  %v404 = vshrl.u32 1326507024, %v389
  %v405 = vor.u32 %v403, %v404
  %vm406 = vcmp.lt.s32.totalorder %v387, 1
  %vm407 = vcmp.lt.s32.totalorder %v387, 2
  %vm408 = vcmp.lt.s32.totalorder %v387, 3
  %vm409 = vcmp.lt.s32.totalorder %v387, 4
  %v410 = vsel %vm406, %v390, %v393
  %v411 = vsel %vm409, %v399, 2102212464
  %v412 = vsel %vm408, %v396, %v411
  %v413 = vsel %vm407, %v410, %v412
  %v414 = vsel %vm406, %v393, %v396
  %v415 = vsel %vm409, %v402, 920167782
  %v416 = vsel %vm408, %v399, %v415
  %v417 = vsel %vm407, %v414, %v416
  %v418 = vsel %vm406, %v396, %v399
  %v419 = vsel %vm409, %v405, 1326507024
  %v420 = vsel %vm408, %v402, %v419
  %v421 = vsel %vm407, %v418, %v420
  %v422 = vshll.u32 %v382, 8
  %v423 = vmul.u32.u64.compose %v422, %v421
  %v424 = vextract.low.u32 %v423
  %v425 = vextract.high.u32 %v423
  %v426 = vmul.u32.u64.compose %v422, %v417
  %v427 = vextract.low.u32 %v426
  %v428 = vextract.high.u32 %v426
  %v429 = vmul.u32 %v422, %v413
  %v430 = vadd.s32 %v425, %v427
  %vm431 = vc.u32 %v425, %v427
  %v432 = vadd.s32 %v428, 1
  %v433 = vsel %vm431, %v432, %v428
  %v434 = vadd.s32 %v429, %v433
  %v435 = vadd.s32 %v434, 536870912
  %v436 = vshrl.u32 %v435, 30
  %v437 = vshll.u32 %v436, 30
  %v438 = vsub.s32 %v434, %v437
  %vm439 = vcmp.lt.s32.totalorder %v438, 0
  %v440 = vsub.s32 0, %v438
  %v441 = vsel %vm439, %v440, %v438
  %v442 = vclz %v441
  %v443 = vsub.s32 %v442, 2
  %vm444 = vcmp.gt.s32.totalorder 0, %v443
  %v445 = vsel %vm444, 0, %v443
  %v446 = vsub.s32 32, %v445
  %v447 = vshll.u32 %v438, %v445
  %v448 = vshrl.u32 %v430, %v446
  %v449 = vor.u32 %v447, %v448
  %v450 = vsub.s32 4294967266, %v445
  %v451 = vadd.s32 %v450, 127
  %v452 = vshll.u32 %v451, 23
  %v453 = vor.u32 4788187, %v452
  %v454 = vand.u32 2147483647, %v453
  %v456 = vcvt.s32.f32 %v449
  %v457 = vmul.f32 %v456, %v454
  %v458 = vxor.u32 %v457, 2147483648
  %v459 = vsel %vm376, %v458, %v457
  %v460 = vsub.s32 4, %v436
  %v461 = vsel %vm376, %v460, %v436
  %v462 = vsel %vm375, %v150, %v459
  %v463 = vsel %vm375, 0, %v461
  %v464 = vcosq.f32.pop %v462
  %v465 = vsinq.f32.pop %v462
  %vm466 = vweird.f32 %v150
  %v467 = vadd.s32 %v463, 3
  %v468 = vand.u32 %v467, 3
  %vm469 = vcmp.lt.s32.totalorder %v468, 2
  %vm470 = vcmp.eq.s32.totalorder %v468, 0
  %v471 = vxor.u32 %v465, 2147483648
  %v472 = vsel %vm470, %v464, %v471
  %vm473 = vcmp.eq.s32.totalorder %v468, 2
  %v474 = vxor.u32 %v464, 2147483648
  %v475 = vsel %vm473, %v474, %v465
  %v476 = vsel %vm469, %v472, %v475
  %v477 = vsel %vm466, nan, %v476
  %v478 = vand.u32 2147483647, %v152
  %vm479 = vcmp.le.f32.partialorder %v478, 0.7853982
  %vm480 = vcmp.lt.s32.totalorder %v152, 0
  %v481 = vand.u32 %v152, 2139095040
  %v482 = vshrl.u32 %v481, 23
  %v483 = vsub.s32 %v482, 127
  %v484 = vand.u32 2147483647, %v152
  %v485 = vand.u32 %v484, 8388607
  %v486 = vor.u32 %v485, 8388608
  %v487 = vsub.s32 0, %v486
  %v488 = vadd.s32 %v483, 1
  %vm489 = vcmp.gt.s32.totalorder %v488, 0
  %v490 = vsel %vm489, %v488, 0
  %v491 = vshrl.u32 %v490, 5
  %v492 = vand.u32 %v490, 31
  %v493 = vsub.s32 32, %v492
  %v494 = vshrl.u32 683565275, %v493
  %v495 = vshll.u32 683565275, %v492
  %v496 = vshrl.u32 2475754826, %v493
  %v497 = vor.u32 %v495, %v496
  %v498 = vshll.u32 2475754826, %v492
  %v499 = vshrl.u32 2131351028, %v493
  %v500 = vor.u32 %v498, %v499
  %v501 = vshll.u32 2131351028, %v492
  %v502 = vshrl.u32 2102212464, %v493
  %v503 = vor.u32 %v501, %v502
  %v504 = vshll.u32 2102212464, %v492
  %v505 = vshrl.u32 920167782, %v493
  %v506 = vor.u32 %v504, %v505
  %v507 = vshll.u32 920167782, %v492
  %v508 = vshrl.u32 1326507024, %v493
  %v509 = vor.u32 %v507, %v508
  %vm510 = vcmp.lt.s32.totalorder %v491, 1
  %vm511 = vcmp.lt.s32.totalorder %v491, 2
  %vm512 = vcmp.lt.s32.totalorder %v491, 3
  %vm513 = vcmp.lt.s32.totalorder %v491, 4
  %v514 = vsel %vm510, %v494, %v497
  %v515 = vsel %vm513, %v503, 2102212464
  %v516 = vsel %vm512, %v500, %v515
  %v517 = vsel %vm511, %v514, %v516
  %v518 = vsel %vm510, %v497, %v500
  %v519 = vsel %vm513, %v506, 920167782
  %v520 = vsel %vm512, %v503, %v519
  %v521 = vsel %vm511, %v518, %v520
  %v522 = vsel %vm510, %v500, %v503
  %v523 = vsel %vm513, %v509, 1326507024
  %v524 = vsel %vm512, %v506, %v523
  %v525 = vsel %vm511, %v522, %v524
  %v526 = vshll.u32 %v486, 8
  %v527 = vmul.u32.u64.compose %v526, %v525
  %v528 = vextract.low.u32 %v527
  %v529 = vextract.high.u32 %v527
  %v530 = vmul.u32.u64.compose %v526, %v521
  %v531 = vextract.low.u32 %v530
  %v532 = vextract.high.u32 %v530
  %v533 = vmul.u32 %v526, %v517
  %v534 = vadd.s32 %v529, %v531
  %vm535 = vc.u32 %v529, %v531
  %v536 = vadd.s32 %v532, 1
  %v537 = vsel %vm535, %v536, %v532
  %v538 = vadd.s32 %v533, %v537
  %v539 = vadd.s32 %v538, 536870912
  %v540 = vshrl.u32 %v539, 30
  %v541 = vshll.u32 %v540, 30
  %v542 = vsub.s32 %v538, %v541
  %vm543 = vcmp.lt.s32.totalorder %v542, 0
  %v544 = vsub.s32 0, %v542
  %v545 = vsel %vm543, %v544, %v542
  %v546 = vclz %v545
  %v547 = vsub.s32 %v546, 2
  %vm548 = vcmp.gt.s32.totalorder 0, %v547
  %v549 = vsel %vm548, 0, %v547
  %v550 = vsub.s32 32, %v549
  %v551 = vshll.u32 %v542, %v549
  %v552 = vshrl.u32 %v534, %v550
  %v553 = vor.u32 %v551, %v552
  %v554 = vsub.s32 4294967266, %v549
  %v555 = vadd.s32 %v554, 127
  %v556 = vshll.u32 %v555, 23
  %v557 = vor.u32 4788187, %v556
  %v558 = vand.u32 2147483647, %v557
  %v560 = vcvt.s32.f32 %v553
  %v561 = vmul.f32 %v560, %v558
  %v562 = vxor.u32 %v561, 2147483648
  %v563 = vsel %vm480, %v562, %v561
  %v564 = vsub.s32 4, %v540
  %v565 = vsel %vm480, %v564, %v540
  %v566 = vsel %vm479, %v152, %v563
  %v567 = vsel %vm479, 0, %v565
  %v568 = vcosq.f32.pop %v566
  %v569 = vsinq.f32.pop %v566
  %vm570 = vweird.f32 %v152
  %v571 = vadd.s32 %v567, 3
  %v572 = vand.u32 %v571, 3
  %vm573 = vcmp.lt.s32.totalorder %v572, 2
  %vm574 = vcmp.eq.s32.totalorder %v572, 0
  %v575 = vxor.u32 %v569, 2147483648
  %v576 = vsel %vm574, %v568, %v575
  %vm577 = vcmp.eq.s32.totalorder %v572, 2
  %v578 = vxor.u32 %v568, 2147483648
  %v579 = vsel %vm577, %v578, %v569
  %v580 = vsel %vm573, %v576, %v579
  %v581 = vsel %vm570, nan, %v580
  %v582 = vand.u32 2147483647, %v156
  %vm583 = vcmp.le.f32.partialorder %v582, 0.7853982
  %vm584 = vcmp.lt.s32.totalorder %v156, 0
  %v585 = vand.u32 %v156, 2139095040
  %v586 = vshrl.u32 %v585, 23
  %v587 = vsub.s32 %v586, 127
  %v588 = vand.u32 2147483647, %v156
  %v589 = vand.u32 %v588, 8388607
  %v590 = vor.u32 %v589, 8388608
  %v591 = vsub.s32 0, %v590
  %v592 = vadd.s32 %v587, 1
  %vm593 = vcmp.gt.s32.totalorder %v592, 0
  %v594 = vsel %vm593, %v592, 0
  %v595 = vshrl.u32 %v594, 5
  %v596 = vand.u32 %v594, 31
  %v597 = vsub.s32 32, %v596
  %v598 = vshrl.u32 683565275, %v597
  %v599 = vshll.u32 683565275, %v596
  %v600 = vshrl.u32 2475754826, %v597
  %v601 = vor.u32 %v599, %v600
  %v602 = vshll.u32 2475754826, %v596
  %v603 = vshrl.u32 2131351028, %v597
  %v604 = vor.u32 %v602, %v603
  %v605 = vshll.u32 2131351028, %v596
  %v606 = vshrl.u32 2102212464, %v597
  %v607 = vor.u32 %v605, %v606
  %v608 = vshll.u32 2102212464, %v596
  %v609 = vshrl.u32 920167782, %v597
  %v610 = vor.u32 %v608, %v609
  %v611 = vshll.u32 920167782, %v596
  %v612 = vshrl.u32 1326507024, %v597
  %v613 = vor.u32 %v611, %v612
  %vm614 = vcmp.lt.s32.totalorder %v595, 1
  %vm615 = vcmp.lt.s32.totalorder %v595, 2
  %vm616 = vcmp.lt.s32.totalorder %v595, 3
  %vm617 = vcmp.lt.s32.totalorder %v595, 4
  %v618 = vsel %vm614, %v598, %v601
  %v619 = vsel %vm617, %v607, 2102212464
  %v620 = vsel %vm616, %v604, %v619
  %v621 = vsel %vm615, %v618, %v620
  %v622 = vsel %vm614, %v601, %v604
  %v623 = vsel %vm617, %v610, 920167782
  %v624 = vsel %vm616, %v607, %v623
  %v625 = vsel %vm615, %v622, %v624
  %v626 = vsel %vm614, %v604, %v607
  %v627 = vsel %vm617, %v613, 1326507024
  %v628 = vsel %vm616, %v610, %v627
  %v629 = vsel %vm615, %v626, %v628
  %v630 = vshll.u32 %v590, 8
  %v631 = vmul.u32.u64.compose %v630, %v629
  %v632 = vextract.low.u32 %v631
  %v633 = vextract.high.u32 %v631
  %v634 = vmul.u32.u64.compose %v630, %v625
  %v635 = vextract.low.u32 %v634
  %v636 = vextract.high.u32 %v634
  %v637 = vmul.u32 %v630, %v621
  %v638 = vadd.s32 %v633, %v635
  %vm639 = vc.u32 %v633, %v635
  %v640 = vadd.s32 %v636, 1
  %v641 = vsel %vm639, %v640, %v636
  %v642 = vadd.s32 %v637, %v641
  %v643 = vadd.s32 %v642, 536870912
  %v644 = vshrl.u32 %v643, 30
  %v645 = vshll.u32 %v644, 30
  %v646 = vsub.s32 %v642, %v645
  %vm647 = vcmp.lt.s32.totalorder %v646, 0
  %v648 = vsub.s32 0, %v646
  %v649 = vsel %vm647, %v648, %v646
  %v650 = vclz %v649
  %v651 = vsub.s32 %v650, 2
  %vm652 = vcmp.gt.s32.totalorder 0, %v651
  %v653 = vsel %vm652, 0, %v651
  %v654 = vsub.s32 32, %v653
  %v655 = vshll.u32 %v646, %v653
  %v656 = vshrl.u32 %v638, %v654
  %v657 = vor.u32 %v655, %v656
  %v658 = vsub.s32 4294967266, %v653
  %v659 = vadd.s32 %v658, 127
  %v660 = vshll.u32 %v659, 23
  %v661 = vor.u32 4788187, %v660
  %v662 = vand.u32 2147483647, %v661
  %v664 = vcvt.s32.f32 %v657
  %v665 = vmul.f32 %v664, %v662
  %v666 = vxor.u32 %v665, 2147483648
  %v667 = vsel %vm584, %v666, %v665
  %v668 = vsub.s32 4, %v644
  %v669 = vsel %vm584, %v668, %v644
  %v670 = vsel %vm583, %v156, %v667
  %v671 = vsel %vm583, 0, %v669
  %v672 = vcosq.f32.pop %v670
  %v673 = vsinq.f32.pop %v670
  %vm674 = vweird.f32 %v156
  %v675 = vadd.s32 %v671, 3
  %v676 = vand.u32 %v675, 3
  %vm677 = vcmp.lt.s32.totalorder %v676, 2
  %vm678 = vcmp.eq.s32.totalorder %v676, 0
  %v679 = vxor.u32 %v673, 2147483648
  %v680 = vsel %vm678, %v672, %v679
  %vm681 = vcmp.eq.s32.totalorder %v676, 2
  %v682 = vxor.u32 %v672, 2147483648
  %v683 = vsel %vm681, %v682, %v673
  %v684 = vsel %vm677, %v680, %v683
  %v685 = vsel %vm674, nan, %v684
  %v686 = vand.u32 2147483647, %v158
  %vm687 = vcmp.le.f32.partialorder %v686, 0.7853982
  %vm688 = vcmp.lt.s32.totalorder %v158, 0
  %v689 = vand.u32 %v158, 2139095040
  %v690 = vshrl.u32 %v689, 23
  %v691 = vsub.s32 %v690, 127
  %v692 = vand.u32 2147483647, %v158
  %v693 = vand.u32 %v692, 8388607
  %v694 = vor.u32 %v693, 8388608
  %v695 = vsub.s32 0, %v694
  %v696 = vadd.s32 %v691, 1
  %vm697 = vcmp.gt.s32.totalorder %v696, 0
  %v698 = vsel %vm697, %v696, 0
  %v699 = vshrl.u32 %v698, 5
  %v700 = vand.u32 %v698, 31
  %v701 = vsub.s32 32, %v700
  %v702 = vshrl.u32 683565275, %v701
  %v703 = vshll.u32 683565275, %v700
  %v704 = vshrl.u32 2475754826, %v701
  %v705 = vor.u32 %v703, %v704
  %v706 = vshll.u32 2475754826, %v700
  %v707 = vshrl.u32 2131351028, %v701
  %v708 = vor.u32 %v706, %v707
  %v709 = vshll.u32 2131351028, %v700
  %v710 = vshrl.u32 2102212464, %v701
  %v711 = vor.u32 %v709, %v710
  %v712 = vshll.u32 2102212464, %v700
  %v713 = vshrl.u32 920167782, %v701
  %v714 = vor.u32 %v712, %v713
  %v715 = vshll.u32 920167782, %v700
  %v716 = vshrl.u32 1326507024, %v701
  %v717 = vor.u32 %v715, %v716
  %vm718 = vcmp.lt.s32.totalorder %v699, 1
  %vm719 = vcmp.lt.s32.totalorder %v699, 2
  %vm720 = vcmp.lt.s32.totalorder %v699, 3
  %vm721 = vcmp.lt.s32.totalorder %v699, 4
  %v722 = vsel %vm718, %v702, %v705
  %v723 = vsel %vm721, %v711, 2102212464
  %v724 = vsel %vm720, %v708, %v723
  %v725 = vsel %vm719, %v722, %v724
  %v726 = vsel %vm718, %v705, %v708
  %v727 = vsel %vm721, %v714, 920167782
  %v728 = vsel %vm720, %v711, %v727
  %v729 = vsel %vm719, %v726, %v728
  %v730 = vsel %vm718, %v708, %v711
  %v731 = vsel %vm721, %v717, 1326507024
  %v732 = vsel %vm720, %v714, %v731
  %v733 = vsel %vm719, %v730, %v732
  %v734 = vshll.u32 %v694, 8
  %v735 = vmul.u32.u64.compose %v734, %v733
  %v736 = vextract.low.u32 %v735
  %v737 = vextract.high.u32 %v735
  %v738 = vmul.u32.u64.compose %v734, %v729
  %v739 = vextract.low.u32 %v738
  %v740 = vextract.high.u32 %v738
  %v741 = vmul.u32 %v734, %v725
  %v742 = vadd.s32 %v737, %v739
  %vm743 = vc.u32 %v737, %v739
  %v744 = vadd.s32 %v740, 1
  %v745 = vsel %vm743, %v744, %v740
  %v746 = vadd.s32 %v741, %v745
  %v747 = vadd.s32 %v746, 536870912
  %v748 = vshrl.u32 %v747, 30
  %v749 = vshll.u32 %v748, 30
  %v750 = vsub.s32 %v746, %v749
  %vm751 = vcmp.lt.s32.totalorder %v750, 0
  %v752 = vsub.s32 0, %v750
  %v753 = vsel %vm751, %v752, %v750
  %v754 = vclz %v753
  %v755 = vsub.s32 %v754, 2
  %vm756 = vcmp.gt.s32.totalorder 0, %v755
  %v757 = vsel %vm756, 0, %v755
  %v758 = vsub.s32 32, %v757
  %v759 = vshll.u32 %v750, %v757
  %v760 = vshrl.u32 %v742, %v758
  %v761 = vor.u32 %v759, %v760
  %v762 = vsub.s32 4294967266, %v757
  %v763 = vadd.s32 %v762, 127
  %v764 = vshll.u32 %v763, 23
  %v765 = vor.u32 4788187, %v764
  %v766 = vand.u32 2147483647, %v765
  %v768 = vcvt.s32.f32 %v761
  %v769 = vmul.f32 %v768, %v766
  %v770 = vxor.u32 %v769, 2147483648
  %v771 = vsel %vm688, %v770, %v769
  %v772 = vsub.s32 4, %v748
  %v773 = vsel %vm688, %v772, %v748
  %v774 = vsel %vm687, %v158, %v771
  %v775 = vsel %vm687, 0, %v773
  %v776 = vcosq.f32.pop %v774
  %v777 = vsinq.f32.pop %v774
  %vm778 = vweird.f32 %v158
  %v779 = vadd.s32 %v775, 3
  %v780 = vand.u32 %v779, 3
  %vm781 = vcmp.lt.s32.totalorder %v780, 2
  %vm782 = vcmp.eq.s32.totalorder %v780, 0
  %v783 = vxor.u32 %v777, 2147483648
  %v784 = vsel %vm782, %v776, %v783
  %vm785 = vcmp.eq.s32.totalorder %v780, 2
  %v786 = vxor.u32 %v776, 2147483648
  %v787 = vsel %vm785, %v786, %v777
  %v788 = vsel %vm781, %v784, %v787
  %v789 = vsel %vm778, nan, %v788
  %v790 = vand.u32 2147483647, %v162
  %vm791 = vcmp.le.f32.partialorder %v790, 0.7853982
  %vm792 = vcmp.lt.s32.totalorder %v162, 0
  %v793 = vand.u32 %v162, 2139095040
  %v794 = vshrl.u32 %v793, 23
  %v795 = vsub.s32 %v794, 127
  %v796 = vand.u32 2147483647, %v162
  %v797 = vand.u32 %v796, 8388607
  %v798 = vor.u32 %v797, 8388608
  %v799 = vsub.s32 0, %v798
  %v800 = vadd.s32 %v795, 1
  %vm801 = vcmp.gt.s32.totalorder %v800, 0
  %v802 = vsel %vm801, %v800, 0
  %v803 = vshrl.u32 %v802, 5
  %v804 = vand.u32 %v802, 31
  %v805 = vsub.s32 32, %v804
  %v806 = vshrl.u32 683565275, %v805
  %v807 = vshll.u32 683565275, %v804
  %v808 = vshrl.u32 2475754826, %v805
  %v809 = vor.u32 %v807, %v808
  %v810 = vshll.u32 2475754826, %v804
  %v811 = vshrl.u32 2131351028, %v805
  %v812 = vor.u32 %v810, %v811
  %v813 = vshll.u32 2131351028, %v804
  %v814 = vshrl.u32 2102212464, %v805
  %v815 = vor.u32 %v813, %v814
  %v816 = vshll.u32 2102212464, %v804
  %v817 = vshrl.u32 920167782, %v805
  %v818 = vor.u32 %v816, %v817
  %v819 = vshll.u32 920167782, %v804
  %v820 = vshrl.u32 1326507024, %v805
  %v821 = vor.u32 %v819, %v820
  %vm822 = vcmp.lt.s32.totalorder %v803, 1
  %vm823 = vcmp.lt.s32.totalorder %v803, 2
  %vm824 = vcmp.lt.s32.totalorder %v803, 3
  %vm825 = vcmp.lt.s32.totalorder %v803, 4
  %v826 = vsel %vm822, %v806, %v809
  %v827 = vsel %vm825, %v815, 2102212464
  %v828 = vsel %vm824, %v812, %v827
  %v829 = vsel %vm823, %v826, %v828
  %v830 = vsel %vm822, %v809, %v812
  %v831 = vsel %vm825, %v818, 920167782
  %v832 = vsel %vm824, %v815, %v831
  %v833 = vsel %vm823, %v830, %v832
  %v834 = vsel %vm822, %v812, %v815
  %v835 = vsel %vm825, %v821, 1326507024
  %v836 = vsel %vm824, %v818, %v835
  %v837 = vsel %vm823, %v834, %v836
  %v838 = vshll.u32 %v798, 8
  %v839 = vmul.u32.u64.compose %v838, %v837
  %v840 = vextract.low.u32 %v839
  %v841 = vextract.high.u32 %v839
  %v842 = vmul.u32.u64.compose %v838, %v833
  %v843 = vextract.low.u32 %v842
  %v844 = vextract.high.u32 %v842
  %v845 = vmul.u32 %v838, %v829
  %v846 = vadd.s32 %v841, %v843
  %vm847 = vc.u32 %v841, %v843
  %v848 = vadd.s32 %v844, 1
  %v849 = vsel %vm847, %v848, %v844
  %v850 = vadd.s32 %v845, %v849
  %v851 = vadd.s32 %v850, 536870912
  %v852 = vshrl.u32 %v851, 30
  %v853 = vshll.u32 %v852, 30
  %v854 = vsub.s32 %v850, %v853
  %vm855 = vcmp.lt.s32.totalorder %v854, 0
  %v856 = vsub.s32 0, %v854
  %v857 = vsel %vm855, %v856, %v854
  %v858 = vclz %v857
  %v859 = vsub.s32 %v858, 2
  %vm860 = vcmp.gt.s32.totalorder 0, %v859
  %v861 = vsel %vm860, 0, %v859
  %v862 = vsub.s32 32, %v861
  %v863 = vshll.u32 %v854, %v861
  %v864 = vshrl.u32 %v846, %v862
  %v865 = vor.u32 %v863, %v864
  %v866 = vsub.s32 4294967266, %v861
  %v867 = vadd.s32 %v866, 127
  %v868 = vshll.u32 %v867, 23
  %v869 = vor.u32 4788187, %v868
  %v870 = vand.u32 2147483647, %v869
  %v872 = vcvt.s32.f32 %v865
  %v873 = vmul.f32 %v872, %v870
  %v874 = vxor.u32 %v873, 2147483648
  %v875 = vsel %vm792, %v874, %v873
  %v876 = vsub.s32 4, %v852
  %v877 = vsel %vm792, %v876, %v852
  %v878 = vsel %vm791, %v162, %v875
  %v879 = vsel %vm791, 0, %v877
  %v880 = vcosq.f32.pop %v878
  %v881 = vsinq.f32.pop %v878
  %vm882 = vweird.f32 %v162
  %v883 = vadd.s32 %v879, 3
  %v884 = vand.u32 %v883, 3
  %vm885 = vcmp.lt.s32.totalorder %v884, 2
  %vm886 = vcmp.eq.s32.totalorder %v884, 0
  %v887 = vxor.u32 %v881, 2147483648
  %v888 = vsel %vm886, %v880, %v887
  %vm889 = vcmp.eq.s32.totalorder %v884, 2
  %v890 = vxor.u32 %v880, 2147483648
  %v891 = vsel %vm889, %v890, %v881
  %v892 = vsel %vm885, %v888, %v891
  %v893 = vsel %vm882, nan, %v892
  %v894 = vand.u32 2147483647, %v164
  %vm895 = vcmp.le.f32.partialorder %v894, 0.7853982
  %vm896 = vcmp.lt.s32.totalorder %v164, 0
  %v897 = vand.u32 %v164, 2139095040
  %v898 = vshrl.u32 %v897, 23
  %v899 = vsub.s32 %v898, 127
  %v900 = vand.u32 2147483647, %v164
  %v901 = vand.u32 %v900, 8388607
  %v902 = vor.u32 %v901, 8388608
  %v903 = vsub.s32 0, %v902
  %v904 = vadd.s32 %v899, 1
  %vm905 = vcmp.gt.s32.totalorder %v904, 0
  %v906 = vsel %vm905, %v904, 0
  %v907 = vshrl.u32 %v906, 5
  %v908 = vand.u32 %v906, 31
  %v909 = vsub.s32 32, %v908
  %v910 = vshrl.u32 683565275, %v909
  %v911 = vshll.u32 683565275, %v908
  %v912 = vshrl.u32 2475754826, %v909
  %v913 = vor.u32 %v911, %v912
  %v914 = vshll.u32 2475754826, %v908
  %v915 = vshrl.u32 2131351028, %v909
  %v916 = vor.u32 %v914, %v915
  %v917 = vshll.u32 2131351028, %v908
  %v918 = vshrl.u32 2102212464, %v909
  %v919 = vor.u32 %v917, %v918
  %v920 = vshll.u32 2102212464, %v908
  %v921 = vshrl.u32 920167782, %v909
  %v922 = vor.u32 %v920, %v921
  %v923 = vshll.u32 920167782, %v908
  %v924 = vshrl.u32 1326507024, %v909
  %v925 = vor.u32 %v923, %v924
  %vm926 = vcmp.lt.s32.totalorder %v907, 1
  %vm927 = vcmp.lt.s32.totalorder %v907, 2
  %vm928 = vcmp.lt.s32.totalorder %v907, 3
  %vm929 = vcmp.lt.s32.totalorder %v907, 4
  %v930 = vsel %vm926, %v910, %v913
  %v931 = vsel %vm929, %v919, 2102212464
  %v932 = vsel %vm928, %v916, %v931
  %v933 = vsel %vm927, %v930, %v932
  %v934 = vsel %vm926, %v913, %v916
  %v935 = vsel %vm929, %v922, 920167782
  %v936 = vsel %vm928, %v919, %v935
  %v937 = vsel %vm927, %v934, %v936
  %v938 = vsel %vm926, %v916, %v919
  %v939 = vsel %vm929, %v925, 1326507024
  %v940 = vsel %vm928, %v922, %v939
  %v941 = vsel %vm927, %v938, %v940
  %v942 = vshll.u32 %v902, 8
  %v943 = vmul.u32.u64.compose %v942, %v941
  %v944 = vextract.low.u32 %v943
  %v945 = vextract.high.u32 %v943
  %v946 = vmul.u32.u64.compose %v942, %v937
  %v947 = vextract.low.u32 %v946
  %v948 = vextract.high.u32 %v946
  %v949 = vmul.u32 %v942, %v933
  %v950 = vadd.s32 %v945, %v947
  %vm951 = vc.u32 %v945, %v947
  %v952 = vadd.s32 %v948, 1
  %v953 = vsel %vm951, %v952, %v948
  %v954 = vadd.s32 %v949, %v953
  %v955 = vadd.s32 %v954, 536870912
  %v956 = vshrl.u32 %v955, 30
  %v957 = vshll.u32 %v956, 30
  %v958 = vsub.s32 %v954, %v957
  %vm959 = vcmp.lt.s32.totalorder %v958, 0
  %v960 = vsub.s32 0, %v958
  %v961 = vsel %vm959, %v960, %v958
  %v962 = vclz %v961
  %v963 = vsub.s32 %v962, 2
  %vm964 = vcmp.gt.s32.totalorder 0, %v963
  %v965 = vsel %vm964, 0, %v963
  %v966 = vsub.s32 32, %v965
  %v967 = vshll.u32 %v958, %v965
  %v968 = vshrl.u32 %v950, %v966
  %v969 = vor.u32 %v967, %v968
  %v970 = vsub.s32 4294967266, %v965
  %v971 = vadd.s32 %v970, 127
  %v972 = vshll.u32 %v971, 23
  %v973 = vor.u32 4788187, %v972
  %v974 = vand.u32 2147483647, %v973
  %v976 = vcvt.s32.f32 %v969
  %v977 = vmul.f32 %v976, %v974
  %v978 = vxor.u32 %v977, 2147483648
  %v979 = vsel %vm896, %v978, %v977
  %v980 = vsub.s32 4, %v956
  %v981 = vsel %vm896, %v980, %v956
  %v982 = vsel %vm895, %v164, %v979
  %v983 = vsel %vm895, 0, %v981
  %v984 = vcosq.f32.pop %v982
  %v985 = vsinq.f32.pop %v982
  %vm986 = vweird.f32 %v164
  %v987 = vadd.s32 %v983, 3
  %v988 = vand.u32 %v987, 3
  %vm989 = vcmp.lt.s32.totalorder %v988, 2
  %vm990 = vcmp.eq.s32.totalorder %v988, 0
  %v991 = vxor.u32 %v985, 2147483648
  %v992 = vsel %vm990, %v984, %v991
  %vm993 = vcmp.eq.s32.totalorder %v988, 2
  %v994 = vxor.u32 %v984, 2147483648
  %v995 = vsel %vm993, %v994, %v985
  %v996 = vsel %vm989, %v992, %v995
  %v997 = vsel %vm986, nan, %v996
  %v998 = vld [vmem:[%s4] sm:$0xff]
  %v999 = vld [vmem:[%s4 + $0x8] sm:$0xff]
  %v1000 = vld [vmem:[%s4 + $0x10] sm:$0xff]
  %v1001 = vld [vmem:[%s4 + $0x18] sm:$0xff]
  %v1002 = vld [vmem:[%s5] sm:$0xff]
  %v1003 = vld [vmem:[%s5 + $0x8] sm:$0xff]
  %v1004 = vld [vmem:[%s5 + $0x10] sm:$0xff]
  %v1005 = vld [vmem:[%s5 + $0x18] sm:$0xff]
  %1007 = vset.pattern.permute.xlu0 0
  %1008 = vperm.xlu0 %1007, %v1002
  %v1009 = vpop.permute.xlu0 %1008
  %1012 = vset.pattern.permute.xlu0 0
  %1013 = vperm.xlu0 %1012, %v1003
  %v1014 = vpop.permute.xlu0 %1013
  %1017 = vset.pattern.permute.xlu0 0
  %1018 = vperm.xlu0 %1017, %v1004
  %v1019 = vpop.permute.xlu0 %1018
  %1022 = vset.pattern.permute.xlu0 0
  %1023 = vperm.xlu0 %1022, %v1005
  %v1024 = vpop.permute.xlu0 %1023
  %vm1026 = vcmask 261120
  %v1028 = vsel %vm1026, %v998, 0
  %v1031 = vsel %vm1026, %v999, 0
  %v1034 = vsel %vm1026, %v1000, 0
  %v1037 = vsel %vm1026, %v1001, 0
  %1039 = vmatprep.subr.mxu0 %v373
  %1040 = vmatpush1.msra.mxu0 %v269
  %1041 = vmatprep.subr.mxu0 %v581
  %1042 = vmatpush1.msra.mxu0 %v477
  %1043 = vmatprep.subr.mxu0 %v789
  %1044 = vmatpush1.msra.mxu0 %v685
  %1045 = vmatprep.subr.mxu0 %v997
  %1046 = vmatpush1.msra.mxu0 %v893
  %1047 = vmatprep.subr.mxu0 0.0
  %1048 = vmatpush1.msra.mxu0 0.0
  %1049 = vmatprep.subr.mxu0 0.0
  %1050 = vmatpush1.msra.mxu0 0.0
  %1051 = vmatprep.subr.mxu0 0.0
  %1052 = vmatpush1.msra.mxu0 0.0
  %1053 = vmatprep.subr.mxu0 0.0
  %1054 = vmatpush1.msra.mxu0 0.0
  %1055 = vmatprep.subr.mxu0 0.0
  %1056 = vmatpush1.msra.mxu0 0.0
  %1057 = vmatprep.subr.mxu0 0.0
  %1058 = vmatpush1.msra.mxu0 0.0
  %1059 = vmatprep.subr.mxu0 0.0
  %1060 = vmatpush1.msra.mxu0 0.0
  %1061 = vmatprep.subr.mxu0 0.0
  %1062 = vmatpush1.msra.mxu0 0.0
  %1063 = vmatprep.subr.mxu0 0.0
  %1064 = vmatpush1.msra.mxu0 0.0
  %1065 = vmatprep.subr.mxu0 0.0
  %1066 = vmatpush1.msra.mxu0 0.0
  %1067 = vmatprep.subr.mxu0 0.0
  %1068 = vmatpush1.msra.mxu0 0.0
  %1069 = vmatprep.subr.mxu0 0.0
  %1070 = vmatpush1.msra.mxu0 0.0
  %1071 = vmatprep.subr.mxu0 0.0
  %1072 = vmatpush1.msra.mxu0 0.0
  %1073 = vmatprep.subr.mxu0 0.0
  %1074 = vmatpush1.msra.mxu0 0.0
  %1075 = vmatprep.subr.mxu0 0.0
  %1076 = vmatpush1.msra.mxu0 0.0
  %1077 = vmatprep.subr.mxu0 0.0
  %1078 = vmatpush1.msra.mxu0 0.0
  %1079 = vmatprep.subr.mxu0 0.0
  %1080 = vmatpush1.msra.mxu0 0.0
  %1081 = vmatprep.subr.mxu0 0.0
  %1082 = vmatpush1.msra.mxu0 0.0
  %1083 = vmatprep.subr.mxu0 0.0
  %1084 = vmatpush1.msra.mxu0 0.0
  %1085 = vmatprep.subr.mxu0 0.0
  %1086 = vmatpush1.msra.mxu0 0.0
  %1087 = vmatprep.subr.mxu0 0.0
  %1088 = vmatpush1.msra.mxu0 0.0
  %1089 = vmatprep.subr.mxu0 0.0
  %1090 = vmatpush1.msra.mxu0 0.0
  %1091 = vmatprep.subr.mxu0 0.0
  %1092 = vmatpush1.msra.mxu0 0.0
  %1093 = vmatprep.subr.mxu0 0.0
  %1094 = vmatpush1.msra.mxu0 0.0
  %1095 = vmatprep.subr.mxu0 0.0
  %1096 = vmatpush1.msra.mxu0 0.0
  %1097 = vmatprep.subr.mxu0 0.0
  %1098 = vmatpush1.msra.mxu0 0.0
  %1099 = vmatprep.subr.mxu0 0.0
  %1100 = vmatpush1.msra.mxu0 0.0
  %1101 = vmatprep.subr.mxu0 0.0
  %1102 = vmatpush1.msra.mxu0 0.0
  %1103 = vmatprep.mubr.f32.mxu0 0.0
  %1104 = vmatmul.mubr.f32.gmra.mrb[0].mxu0 %v1028
  %v1105 = vpop.f32.mrb[0].mxu0
  %v1106 = vadd.f32 %v1009, %v1105
  %v1107 = vpop.f32.mrb[0].mxu0
  %v1108 = vadd.f32 %v1009, %v1107
  %1109 = vmatprep.mubr.f32.mxu0 0.0
  %1110 = vmatmul.mubr.f32.gmra.mrb[0].mxu0 %v1031
  %v1111 = vpop.f32.mrb[0].mxu0
  %v1112 = vadd.f32 %v1014, %v1111
  %v1113 = vpop.f32.mrb[0].mxu0
  %v1114 = vadd.f32 %v1014, %v1113
  %1115 = vmatprep.mubr.f32.mxu0 0.0
  %1116 = vmatmul.mubr.f32.gmra.mrb[0].mxu0 %v1034
  %v1117 = vpop.f32.mrb[0].mxu0
  %v1118 = vadd.f32 %v1019, %v1117
  %v1119 = vpop.f32.mrb[0].mxu0
  %v1120 = vadd.f32 %v1019, %v1119
  %1121 = vmatprep.mubr.f32.mxu0 0.0
  %1122 = vmatmul.mubr.f32.gmra.mrb[0].mxu0 %v1037
  %v1123 = vpop.f32.mrb[0].mxu0
  %v1124 = vadd.f32 %v1024, %v1123
  %v1125 = vpop.f32.mrb[0].mxu0
  %v1126 = vadd.f32 %v1024, %v1125
  %1127 = vdwg.mxu0
  %v1128 = vand.u32 2147483647, %v1106
  %vm1129 = vcmp.le.f32.partialorder %v1128, 0.7853982
  %vm1130 = vcmp.lt.s32.totalorder %v1106, 0
  %v1131 = vand.u32 %v1106, 2139095040
  %v1132 = vshrl.u32 %v1131, 23
  %v1133 = vsub.s32 %v1132, 127
  %v1134 = vand.u32 2147483647, %v1106
  %v1135 = vand.u32 %v1134, 8388607
  %v1136 = vor.u32 %v1135, 8388608
  %v1137 = vsub.s32 0, %v1136
  %v1138 = vadd.s32 %v1133, 1
  %vm1139 = vcmp.gt.s32.totalorder %v1138, 0
  %v1140 = vsel %vm1139, %v1138, 0
  %v1141 = vshrl.u32 %v1140, 5
  %v1142 = vand.u32 %v1140, 31
  %v1143 = vsub.s32 32, %v1142
  %v1144 = vshrl.u32 683565275, %v1143
  %v1145 = vshll.u32 683565275, %v1142
  %v1146 = vshrl.u32 2475754826, %v1143
  %v1147 = vor.u32 %v1145, %v1146
  %v1148 = vshll.u32 2475754826, %v1142
  %v1149 = vshrl.u32 2131351028, %v1143
  %v1150 = vor.u32 %v1148, %v1149
  %v1151 = vshll.u32 2131351028, %v1142
  %v1152 = vshrl.u32 2102212464, %v1143
  %v1153 = vor.u32 %v1151, %v1152
  %v1154 = vshll.u32 2102212464, %v1142
  %v1155 = vshrl.u32 920167782, %v1143
  %v1156 = vor.u32 %v1154, %v1155
  %v1157 = vshll.u32 920167782, %v1142
  %v1158 = vshrl.u32 1326507024, %v1143
  %v1159 = vor.u32 %v1157, %v1158
  %vm1160 = vcmp.lt.s32.totalorder %v1141, 1
  %vm1161 = vcmp.lt.s32.totalorder %v1141, 2
  %vm1162 = vcmp.lt.s32.totalorder %v1141, 3
  %vm1163 = vcmp.lt.s32.totalorder %v1141, 4
  %v1164 = vsel %vm1160, %v1144, %v1147
  %v1165 = vsel %vm1163, %v1153, 2102212464
  %v1166 = vsel %vm1162, %v1150, %v1165
  %v1167 = vsel %vm1161, %v1164, %v1166
  %v1168 = vsel %vm1160, %v1147, %v1150
  %v1169 = vsel %vm1163, %v1156, 920167782
  %v1170 = vsel %vm1162, %v1153, %v1169
  %v1171 = vsel %vm1161, %v1168, %v1170
  %v1172 = vsel %vm1160, %v1150, %v1153
  %v1173 = vsel %vm1163, %v1159, 1326507024
  %v1174 = vsel %vm1162, %v1156, %v1173
  %v1175 = vsel %vm1161, %v1172, %v1174
  %v1176 = vshll.u32 %v1136, 8
  %v1177 = vmul.u32.u64.compose %v1176, %v1175
  %v1178 = vextract.low.u32 %v1177
  %v1179 = vextract.high.u32 %v1177
  %v1180 = vmul.u32.u64.compose %v1176, %v1171
  %v1181 = vextract.low.u32 %v1180
  %v1182 = vextract.high.u32 %v1180
  %v1183 = vmul.u32 %v1176, %v1167
  %v1184 = vadd.s32 %v1179, %v1181
  %vm1185 = vc.u32 %v1179, %v1181
  %v1186 = vadd.s32 %v1182, 1
  %v1187 = vsel %vm1185, %v1186, %v1182
  %v1188 = vadd.s32 %v1183, %v1187
  %v1189 = vadd.s32 %v1188, 536870912
  %v1190 = vshrl.u32 %v1189, 30
  %v1191 = vshll.u32 %v1190, 30
  %v1192 = vsub.s32 %v1188, %v1191
  %vm1193 = vcmp.lt.s32.totalorder %v1192, 0
  %v1194 = vsub.s32 0, %v1192
  %v1195 = vsel %vm1193, %v1194, %v1192
  %v1196 = vclz %v1195
  %v1197 = vsub.s32 %v1196, 2
  %vm1198 = vcmp.gt.s32.totalorder 0, %v1197
  %v1199 = vsel %vm1198, 0, %v1197
  %v1200 = vsub.s32 32, %v1199
  %v1201 = vshll.u32 %v1192, %v1199
  %v1202 = vshrl.u32 %v1184, %v1200
  %v1203 = vor.u32 %v1201, %v1202
  %v1204 = vsub.s32 4294967266, %v1199
  %v1205 = vadd.s32 %v1204, 127
  %v1206 = vshll.u32 %v1205, 23
  %v1207 = vor.u32 4788187, %v1206
  %v1208 = vand.u32 2147483647, %v1207
  %v1210 = vcvt.s32.f32 %v1203
  %v1211 = vmul.f32 %v1210, %v1208
  %v1212 = vxor.u32 %v1211, 2147483648
  %v1213 = vsel %vm1130, %v1212, %v1211
  %v1214 = vsub.s32 4, %v1190
  %v1215 = vsel %vm1130, %v1214, %v1190
  %v1216 = vsel %vm1129, %v1106, %v1213
  %v1217 = vsel %vm1129, 0, %v1215
  %v1218 = vcosq.f32.pop %v1216
  %v1219 = vsinq.f32.pop %v1216
  %vm1220 = vweird.f32 %v1106
  %v1221 = vadd.s32 %v1217, 3
  %v1222 = vand.u32 %v1221, 3
  %vm1223 = vcmp.lt.s32.totalorder %v1222, 2
  %vm1224 = vcmp.eq.s32.totalorder %v1222, 0
  %v1225 = vxor.u32 %v1219, 2147483648
  %v1226 = vsel %vm1224, %v1218, %v1225
  %vm1227 = vcmp.eq.s32.totalorder %v1222, 2
  %v1228 = vxor.u32 %v1218, 2147483648
  %v1229 = vsel %vm1227, %v1228, %v1219
  %v1230 = vsel %vm1223, %v1226, %v1229
  %v1231 = vsel %vm1220, nan, %v1230
  %v1232 = vand.u32 2147483647, %v1108
  %vm1233 = vcmp.le.f32.partialorder %v1232, 0.7853982
  %vm1234 = vcmp.lt.s32.totalorder %v1108, 0
  %v1235 = vand.u32 %v1108, 2139095040
  %v1236 = vshrl.u32 %v1235, 23
  %v1237 = vsub.s32 %v1236, 127
  %v1238 = vand.u32 2147483647, %v1108
  %v1239 = vand.u32 %v1238, 8388607
  %v1240 = vor.u32 %v1239, 8388608
  %v1241 = vsub.s32 0, %v1240
  %v1242 = vadd.s32 %v1237, 1
  %vm1243 = vcmp.gt.s32.totalorder %v1242, 0
  %v1244 = vsel %vm1243, %v1242, 0
  %v1245 = vshrl.u32 %v1244, 5
  %v1246 = vand.u32 %v1244, 31
  %v1247 = vsub.s32 32, %v1246
  %v1248 = vshrl.u32 683565275, %v1247
  %v1249 = vshll.u32 683565275, %v1246
  %v1250 = vshrl.u32 2475754826, %v1247
  %v1251 = vor.u32 %v1249, %v1250
  %v1252 = vshll.u32 2475754826, %v1246
  %v1253 = vshrl.u32 2131351028, %v1247
  %v1254 = vor.u32 %v1252, %v1253
  %v1255 = vshll.u32 2131351028, %v1246
  %v1256 = vshrl.u32 2102212464, %v1247
  %v1257 = vor.u32 %v1255, %v1256
  %v1258 = vshll.u32 2102212464, %v1246
  %v1259 = vshrl.u32 920167782, %v1247
  %v1260 = vor.u32 %v1258, %v1259
  %v1261 = vshll.u32 920167782, %v1246
  %v1262 = vshrl.u32 1326507024, %v1247
  %v1263 = vor.u32 %v1261, %v1262
  %vm1264 = vcmp.lt.s32.totalorder %v1245, 1
  %vm1265 = vcmp.lt.s32.totalorder %v1245, 2
  %vm1266 = vcmp.lt.s32.totalorder %v1245, 3
  %vm1267 = vcmp.lt.s32.totalorder %v1245, 4
  %v1268 = vsel %vm1264, %v1248, %v1251
  %v1269 = vsel %vm1267, %v1257, 2102212464
  %v1270 = vsel %vm1266, %v1254, %v1269
  %v1271 = vsel %vm1265, %v1268, %v1270
  %v1272 = vsel %vm1264, %v1251, %v1254
  %v1273 = vsel %vm1267, %v1260, 920167782
  %v1274 = vsel %vm1266, %v1257, %v1273
  %v1275 = vsel %vm1265, %v1272, %v1274
  %v1276 = vsel %vm1264, %v1254, %v1257
  %v1277 = vsel %vm1267, %v1263, 1326507024
  %v1278 = vsel %vm1266, %v1260, %v1277
  %v1279 = vsel %vm1265, %v1276, %v1278
  %v1280 = vshll.u32 %v1240, 8
  %v1281 = vmul.u32.u64.compose %v1280, %v1279
  %v1282 = vextract.low.u32 %v1281
  %v1283 = vextract.high.u32 %v1281
  %v1284 = vmul.u32.u64.compose %v1280, %v1275
  %v1285 = vextract.low.u32 %v1284
  %v1286 = vextract.high.u32 %v1284
  %v1287 = vmul.u32 %v1280, %v1271
  %v1288 = vadd.s32 %v1283, %v1285
  %vm1289 = vc.u32 %v1283, %v1285
  %v1290 = vadd.s32 %v1286, 1
  %v1291 = vsel %vm1289, %v1290, %v1286
  %v1292 = vadd.s32 %v1287, %v1291
  %v1293 = vadd.s32 %v1292, 536870912
  %v1294 = vshrl.u32 %v1293, 30
  %v1295 = vshll.u32 %v1294, 30
  %v1296 = vsub.s32 %v1292, %v1295
  %vm1297 = vcmp.lt.s32.totalorder %v1296, 0
  %v1298 = vsub.s32 0, %v1296
  %v1299 = vsel %vm1297, %v1298, %v1296
  %v1300 = vclz %v1299
  %v1301 = vsub.s32 %v1300, 2
  %vm1302 = vcmp.gt.s32.totalorder 0, %v1301
  %v1303 = vsel %vm1302, 0, %v1301
  %v1304 = vsub.s32 32, %v1303
  %v1305 = vshll.u32 %v1296, %v1303
  %v1306 = vshrl.u32 %v1288, %v1304
  %v1307 = vor.u32 %v1305, %v1306
  %v1308 = vsub.s32 4294967266, %v1303
  %v1309 = vadd.s32 %v1308, 127
  %v1310 = vshll.u32 %v1309, 23
  %v1311 = vor.u32 4788187, %v1310
  %v1312 = vand.u32 2147483647, %v1311
  %v1314 = vcvt.s32.f32 %v1307
  %v1315 = vmul.f32 %v1314, %v1312
  %v1316 = vxor.u32 %v1315, 2147483648
  %v1317 = vsel %vm1234, %v1316, %v1315
  %v1318 = vsub.s32 4, %v1294
  %v1319 = vsel %vm1234, %v1318, %v1294
  %v1320 = vsel %vm1233, %v1108, %v1317
  %v1321 = vsel %vm1233, 0, %v1319
  %v1322 = vcosq.f32.pop %v1320
  %v1323 = vsinq.f32.pop %v1320
  %vm1324 = vweird.f32 %v1108
  %v1325 = vadd.s32 %v1321, 3
  %v1326 = vand.u32 %v1325, 3
  %vm1327 = vcmp.lt.s32.totalorder %v1326, 2
  %vm1328 = vcmp.eq.s32.totalorder %v1326, 0
  %v1329 = vxor.u32 %v1323, 2147483648
  %v1330 = vsel %vm1328, %v1322, %v1329
  %vm1331 = vcmp.eq.s32.totalorder %v1326, 2
  %v1332 = vxor.u32 %v1322, 2147483648
  %v1333 = vsel %vm1331, %v1332, %v1323
  %v1334 = vsel %vm1327, %v1330, %v1333
  %v1335 = vsel %vm1324, nan, %v1334
  %v1336 = vand.u32 2147483647, %v1112
  %vm1337 = vcmp.le.f32.partialorder %v1336, 0.7853982
  %vm1338 = vcmp.lt.s32.totalorder %v1112, 0
  %v1339 = vand.u32 %v1112, 2139095040
  %v1340 = vshrl.u32 %v1339, 23
  %v1341 = vsub.s32 %v1340, 127
  %v1342 = vand.u32 2147483647, %v1112
  %v1343 = vand.u32 %v1342, 8388607
  %v1344 = vor.u32 %v1343, 8388608
  %v1345 = vsub.s32 0, %v1344
  %v1346 = vadd.s32 %v1341, 1
  %vm1347 = vcmp.gt.s32.totalorder %v1346, 0
  %v1348 = vsel %vm1347, %v1346, 0
  %v1349 = vshrl.u32 %v1348, 5
  %v1350 = vand.u32 %v1348, 31
  %v1351 = vsub.s32 32, %v1350
  %v1352 = vshrl.u32 683565275, %v1351
  %v1353 = vshll.u32 683565275, %v1350
  %v1354 = vshrl.u32 2475754826, %v1351
  %v1355 = vor.u32 %v1353, %v1354
  %v1356 = vshll.u32 2475754826, %v1350
  %v1357 = vshrl.u32 2131351028, %v1351
  %v1358 = vor.u32 %v1356, %v1357
  %v1359 = vshll.u32 2131351028, %v1350
  %v1360 = vshrl.u32 2102212464, %v1351
  %v1361 = vor.u32 %v1359, %v1360
  %v1362 = vshll.u32 2102212464, %v1350
  %v1363 = vshrl.u32 920167782, %v1351
  %v1364 = vor.u32 %v1362, %v1363
  %v1365 = vshll.u32 920167782, %v1350
  %v1366 = vshrl.u32 1326507024, %v1351
  %v1367 = vor.u32 %v1365, %v1366
  %vm1368 = vcmp.lt.s32.totalorder %v1349, 1
  %vm1369 = vcmp.lt.s32.totalorder %v1349, 2
  %vm1370 = vcmp.lt.s32.totalorder %v1349, 3
  %vm1371 = vcmp.lt.s32.totalorder %v1349, 4
  %v1372 = vsel %vm1368, %v1352, %v1355
  %v1373 = vsel %vm1371, %v1361, 2102212464
  %v1374 = vsel %vm1370, %v1358, %v1373
  %v1375 = vsel %vm1369, %v1372, %v1374
  %v1376 = vsel %vm1368, %v1355, %v1358
  %v1377 = vsel %vm1371, %v1364, 920167782
  %v1378 = vsel %vm1370, %v1361, %v1377
  %v1379 = vsel %vm1369, %v1376, %v1378
  %v1380 = vsel %vm1368, %v1358, %v1361
  %v1381 = vsel %vm1371, %v1367, 1326507024
  %v1382 = vsel %vm1370, %v1364, %v1381
  %v1383 = vsel %vm1369, %v1380, %v1382
  %v1384 = vshll.u32 %v1344, 8
  %v1385 = vmul.u32.u64.compose %v1384, %v1383
  %v1386 = vextract.low.u32 %v1385
  %v1387 = vextract.high.u32 %v1385
  %v1388 = vmul.u32.u64.compose %v1384, %v1379
  %v1389 = vextract.low.u32 %v1388
  %v1390 = vextract.high.u32 %v1388
  %v1391 = vmul.u32 %v1384, %v1375
  %v1392 = vadd.s32 %v1387, %v1389
  %vm1393 = vc.u32 %v1387, %v1389
  %v1394 = vadd.s32 %v1390, 1
  %v1395 = vsel %vm1393, %v1394, %v1390
  %v1396 = vadd.s32 %v1391, %v1395
  %v1397 = vadd.s32 %v1396, 536870912
  %v1398 = vshrl.u32 %v1397, 30
  %v1399 = vshll.u32 %v1398, 30
  %v1400 = vsub.s32 %v1396, %v1399
  %vm1401 = vcmp.lt.s32.totalorder %v1400, 0
  %v1402 = vsub.s32 0, %v1400
  %v1403 = vsel %vm1401, %v1402, %v1400
  %v1404 = vclz %v1403
  %v1405 = vsub.s32 %v1404, 2
  %vm1406 = vcmp.gt.s32.totalorder 0, %v1405
  %v1407 = vsel %vm1406, 0, %v1405
  %v1408 = vsub.s32 32, %v1407
  %v1409 = vshll.u32 %v1400, %v1407
  %v1410 = vshrl.u32 %v1392, %v1408
  %v1411 = vor.u32 %v1409, %v1410
  %v1412 = vsub.s32 4294967266, %v1407
  %v1413 = vadd.s32 %v1412, 127
  %v1414 = vshll.u32 %v1413, 23
  %v1415 = vor.u32 4788187, %v1414
  %v1416 = vand.u32 2147483647, %v1415
  %v1418 = vcvt.s32.f32 %v1411
  %v1419 = vmul.f32 %v1418, %v1416
  %v1420 = vxor.u32 %v1419, 2147483648
  %v1421 = vsel %vm1338, %v1420, %v1419
  %v1422 = vsub.s32 4, %v1398
  %v1423 = vsel %vm1338, %v1422, %v1398
  %v1424 = vsel %vm1337, %v1112, %v1421
  %v1425 = vsel %vm1337, 0, %v1423
  %v1426 = vcosq.f32.pop %v1424
  %v1427 = vsinq.f32.pop %v1424
  %vm1428 = vweird.f32 %v1112
  %v1429 = vadd.s32 %v1425, 3
  %v1430 = vand.u32 %v1429, 3
  %vm1431 = vcmp.lt.s32.totalorder %v1430, 2
  %vm1432 = vcmp.eq.s32.totalorder %v1430, 0
  %v1433 = vxor.u32 %v1427, 2147483648
  %v1434 = vsel %vm1432, %v1426, %v1433
  %vm1435 = vcmp.eq.s32.totalorder %v1430, 2
  %v1436 = vxor.u32 %v1426, 2147483648
  %v1437 = vsel %vm1435, %v1436, %v1427
  %v1438 = vsel %vm1431, %v1434, %v1437
  %v1439 = vsel %vm1428, nan, %v1438
  %v1440 = vand.u32 2147483647, %v1114
  %vm1441 = vcmp.le.f32.partialorder %v1440, 0.7853982
  %vm1442 = vcmp.lt.s32.totalorder %v1114, 0
  %v1443 = vand.u32 %v1114, 2139095040
  %v1444 = vshrl.u32 %v1443, 23
  %v1445 = vsub.s32 %v1444, 127
  %v1446 = vand.u32 2147483647, %v1114
  %v1447 = vand.u32 %v1446, 8388607
  %v1448 = vor.u32 %v1447, 8388608
  %v1449 = vsub.s32 0, %v1448
  %v1450 = vadd.s32 %v1445, 1
  %vm1451 = vcmp.gt.s32.totalorder %v1450, 0
  %v1452 = vsel %vm1451, %v1450, 0
  %v1453 = vshrl.u32 %v1452, 5
  %v1454 = vand.u32 %v1452, 31
  %v1455 = vsub.s32 32, %v1454
  %v1456 = vshrl.u32 683565275, %v1455
  %v1457 = vshll.u32 683565275, %v1454
  %v1458 = vshrl.u32 2475754826, %v1455
  %v1459 = vor.u32 %v1457, %v1458
  %v1460 = vshll.u32 2475754826, %v1454
  %v1461 = vshrl.u32 2131351028, %v1455
  %v1462 = vor.u32 %v1460, %v1461
  %v1463 = vshll.u32 2131351028, %v1454
  %v1464 = vshrl.u32 2102212464, %v1455
  %v1465 = vor.u32 %v1463, %v1464
  %v1466 = vshll.u32 2102212464, %v1454
  %v1467 = vshrl.u32 920167782, %v1455
  %v1468 = vor.u32 %v1466, %v1467
  %v1469 = vshll.u32 920167782, %v1454
  %v1470 = vshrl.u32 1326507024, %v1455
  %v1471 = vor.u32 %v1469, %v1470
  %vm1472 = vcmp.lt.s32.totalorder %v1453, 1
  %vm1473 = vcmp.lt.s32.totalorder %v1453, 2
  %vm1474 = vcmp.lt.s32.totalorder %v1453, 3
  %vm1475 = vcmp.lt.s32.totalorder %v1453, 4
  %v1476 = vsel %vm1472, %v1456, %v1459
  %v1477 = vsel %vm1475, %v1465, 2102212464
  %v1478 = vsel %vm1474, %v1462, %v1477
  %v1479 = vsel %vm1473, %v1476, %v1478
  %v1480 = vsel %vm1472, %v1459, %v1462
  %v1481 = vsel %vm1475, %v1468, 920167782
  %v1482 = vsel %vm1474, %v1465, %v1481
  %v1483 = vsel %vm1473, %v1480, %v1482
  %v1484 = vsel %vm1472, %v1462, %v1465
  %v1485 = vsel %vm1475, %v1471, 1326507024
  %v1486 = vsel %vm1474, %v1468, %v1485
  %v1487 = vsel %vm1473, %v1484, %v1486
  %v1488 = vshll.u32 %v1448, 8
  %v1489 = vmul.u32.u64.compose %v1488, %v1487
  %v1490 = vextract.low.u32 %v1489
  %v1491 = vextract.high.u32 %v1489
  %v1492 = vmul.u32.u64.compose %v1488, %v1483
  %v1493 = vextract.low.u32 %v1492
  %v1494 = vextract.high.u32 %v1492
  %v1495 = vmul.u32 %v1488, %v1479
  %v1496 = vadd.s32 %v1491, %v1493
  %vm1497 = vc.u32 %v1491, %v1493
  %v1498 = vadd.s32 %v1494, 1
  %v1499 = vsel %vm1497, %v1498, %v1494
  %v1500 = vadd.s32 %v1495, %v1499
  %v1501 = vadd.s32 %v1500, 536870912
  %v1502 = vshrl.u32 %v1501, 30
  %v1503 = vshll.u32 %v1502, 30
  %v1504 = vsub.s32 %v1500, %v1503
  %vm1505 = vcmp.lt.s32.totalorder %v1504, 0
  %v1506 = vsub.s32 0, %v1504
  %v1507 = vsel %vm1505, %v1506, %v1504
  %v1508 = vclz %v1507
  %v1509 = vsub.s32 %v1508, 2
  %vm1510 = vcmp.gt.s32.totalorder 0, %v1509
  %v1511 = vsel %vm1510, 0, %v1509
  %v1512 = vsub.s32 32, %v1511
  %v1513 = vshll.u32 %v1504, %v1511
  %v1514 = vshrl.u32 %v1496, %v1512
  %v1515 = vor.u32 %v1513, %v1514
  %v1516 = vsub.s32 4294967266, %v1511
  %v1517 = vadd.s32 %v1516, 127
  %v1518 = vshll.u32 %v1517, 23
  %v1519 = vor.u32 4788187, %v1518
  %v1520 = vand.u32 2147483647, %v1519
  %v1522 = vcvt.s32.f32 %v1515
  %v1523 = vmul.f32 %v1522, %v1520
  %v1524 = vxor.u32 %v1523, 2147483648
  %v1525 = vsel %vm1442, %v1524, %v1523
  %v1526 = vsub.s32 4, %v1502
  %v1527 = vsel %vm1442, %v1526, %v1502
  %v1528 = vsel %vm1441, %v1114, %v1525
  %v1529 = vsel %vm1441, 0, %v1527
  %v1530 = vcosq.f32.pop %v1528
  %v1531 = vsinq.f32.pop %v1528
  %vm1532 = vweird.f32 %v1114
  %v1533 = vadd.s32 %v1529, 3
  %v1534 = vand.u32 %v1533, 3
  %vm1535 = vcmp.lt.s32.totalorder %v1534, 2
  %vm1536 = vcmp.eq.s32.totalorder %v1534, 0
  %v1537 = vxor.u32 %v1531, 2147483648
  %v1538 = vsel %vm1536, %v1530, %v1537
  %vm1539 = vcmp.eq.s32.totalorder %v1534, 2
  %v1540 = vxor.u32 %v1530, 2147483648
  %v1541 = vsel %vm1539, %v1540, %v1531
  %v1542 = vsel %vm1535, %v1538, %v1541
  %v1543 = vsel %vm1532, nan, %v1542
  %v1544 = vand.u32 2147483647, %v1118
  %vm1545 = vcmp.le.f32.partialorder %v1544, 0.7853982
  %vm1546 = vcmp.lt.s32.totalorder %v1118, 0
  %v1547 = vand.u32 %v1118, 2139095040
  %v1548 = vshrl.u32 %v1547, 23
  %v1549 = vsub.s32 %v1548, 127
  %v1550 = vand.u32 2147483647, %v1118
  %v1551 = vand.u32 %v1550, 8388607
  %v1552 = vor.u32 %v1551, 8388608
  %v1553 = vsub.s32 0, %v1552
  %v1554 = vadd.s32 %v1549, 1
  %vm1555 = vcmp.gt.s32.totalorder %v1554, 0
  %v1556 = vsel %vm1555, %v1554, 0
  %v1557 = vshrl.u32 %v1556, 5
  %v1558 = vand.u32 %v1556, 31
  %v1559 = vsub.s32 32, %v1558
  %v1560 = vshrl.u32 683565275, %v1559
  %v1561 = vshll.u32 683565275, %v1558
  %v1562 = vshrl.u32 2475754826, %v1559
  %v1563 = vor.u32 %v1561, %v1562
  %v1564 = vshll.u32 2475754826, %v1558
  %v1565 = vshrl.u32 2131351028, %v1559
  %v1566 = vor.u32 %v1564, %v1565
  %v1567 = vshll.u32 2131351028, %v1558
  %v1568 = vshrl.u32 2102212464, %v1559
  %v1569 = vor.u32 %v1567, %v1568
  %v1570 = vshll.u32 2102212464, %v1558
  %v1571 = vshrl.u32 920167782, %v1559
  %v1572 = vor.u32 %v1570, %v1571
  %v1573 = vshll.u32 920167782, %v1558
  %v1574 = vshrl.u32 1326507024, %v1559
  %v1575 = vor.u32 %v1573, %v1574
  %vm1576 = vcmp.lt.s32.totalorder %v1557, 1
  %vm1577 = vcmp.lt.s32.totalorder %v1557, 2
  %vm1578 = vcmp.lt.s32.totalorder %v1557, 3
  %vm1579 = vcmp.lt.s32.totalorder %v1557, 4
  %v1580 = vsel %vm1576, %v1560, %v1563
  %v1581 = vsel %vm1579, %v1569, 2102212464
  %v1582 = vsel %vm1578, %v1566, %v1581
  %v1583 = vsel %vm1577, %v1580, %v1582
  %v1584 = vsel %vm1576, %v1563, %v1566
  %v1585 = vsel %vm1579, %v1572, 920167782
  %v1586 = vsel %vm1578, %v1569, %v1585
  %v1587 = vsel %vm1577, %v1584, %v1586
  %v1588 = vsel %vm1576, %v1566, %v1569
  %v1589 = vsel %vm1579, %v1575, 1326507024
  %v1590 = vsel %vm1578, %v1572, %v1589
  %v1591 = vsel %vm1577, %v1588, %v1590
  %v1592 = vshll.u32 %v1552, 8
  %v1593 = vmul.u32.u64.compose %v1592, %v1591
  %v1594 = vextract.low.u32 %v1593
  %v1595 = vextract.high.u32 %v1593
  %v1596 = vmul.u32.u64.compose %v1592, %v1587
  %v1597 = vextract.low.u32 %v1596
  %v1598 = vextract.high.u32 %v1596
  %v1599 = vmul.u32 %v1592, %v1583
  %v1600 = vadd.s32 %v1595, %v1597
  %vm1601 = vc.u32 %v1595, %v1597
  %v1602 = vadd.s32 %v1598, 1
  %v1603 = vsel %vm1601, %v1602, %v1598
  %v1604 = vadd.s32 %v1599, %v1603
  %v1605 = vadd.s32 %v1604, 536870912
  %v1606 = vshrl.u32 %v1605, 30
  %v1607 = vshll.u32 %v1606, 30
  %v1608 = vsub.s32 %v1604, %v1607
  %vm1609 = vcmp.lt.s32.totalorder %v1608, 0
  %v1610 = vsub.s32 0, %v1608
  %v1611 = vsel %vm1609, %v1610, %v1608
  %v1612 = vclz %v1611
  %v1613 = vsub.s32 %v1612, 2
  %vm1614 = vcmp.gt.s32.totalorder 0, %v1613
  %v1615 = vsel %vm1614, 0, %v1613
  %v1616 = vsub.s32 32, %v1615
  %v1617 = vshll.u32 %v1608, %v1615
  %v1618 = vshrl.u32 %v1600, %v1616
  %v1619 = vor.u32 %v1617, %v1618
  %v1620 = vsub.s32 4294967266, %v1615
  %v1621 = vadd.s32 %v1620, 127
  %v1622 = vshll.u32 %v1621, 23
  %v1623 = vor.u32 4788187, %v1622
  %v1624 = vand.u32 2147483647, %v1623
  %v1626 = vcvt.s32.f32 %v1619
  %v1627 = vmul.f32 %v1626, %v1624
  %v1628 = vxor.u32 %v1627, 2147483648
  %v1629 = vsel %vm1546, %v1628, %v1627
  %v1630 = vsub.s32 4, %v1606
  %v1631 = vsel %vm1546, %v1630, %v1606
  %v1632 = vsel %vm1545, %v1118, %v1629
  %v1633 = vsel %vm1545, 0, %v1631
  %v1634 = vcosq.f32.pop %v1632
  %v1635 = vsinq.f32.pop %v1632
  %vm1636 = vweird.f32 %v1118
  %v1637 = vadd.s32 %v1633, 3
  %v1638 = vand.u32 %v1637, 3
  %vm1639 = vcmp.lt.s32.totalorder %v1638, 2
  %vm1640 = vcmp.eq.s32.totalorder %v1638, 0
  %v1641 = vxor.u32 %v1635, 2147483648
  %v1642 = vsel %vm1640, %v1634, %v1641
  %vm1643 = vcmp.eq.s32.totalorder %v1638, 2
  %v1644 = vxor.u32 %v1634, 2147483648
  %v1645 = vsel %vm1643, %v1644, %v1635
  %v1646 = vsel %vm1639, %v1642, %v1645
  %v1647 = vsel %vm1636, nan, %v1646
  %v1648 = vand.u32 2147483647, %v1120
  %vm1649 = vcmp.le.f32.partialorder %v1648, 0.7853982
  %vm1650 = vcmp.lt.s32.totalorder %v1120, 0
  %v1651 = vand.u32 %v1120, 2139095040
  %v1652 = vshrl.u32 %v1651, 23
  %v1653 = vsub.s32 %v1652, 127
  %v1654 = vand.u32 2147483647, %v1120
  %v1655 = vand.u32 %v1654, 8388607
  %v1656 = vor.u32 %v1655, 8388608
  %v1657 = vsub.s32 0, %v1656
  %v1658 = vadd.s32 %v1653, 1
  %vm1659 = vcmp.gt.s32.totalorder %v1658, 0
  %v1660 = vsel %vm1659, %v1658, 0
  %v1661 = vshrl.u32 %v1660, 5
  %v1662 = vand.u32 %v1660, 31
  %v1663 = vsub.s32 32, %v1662
  %v1664 = vshrl.u32 683565275, %v1663
  %v1665 = vshll.u32 683565275, %v1662
  %v1666 = vshrl.u32 2475754826, %v1663
  %v1667 = vor.u32 %v1665, %v1666
  %v1668 = vshll.u32 2475754826, %v1662
  %v1669 = vshrl.u32 2131351028, %v1663
  %v1670 = vor.u32 %v1668, %v1669
  %v1671 = vshll.u32 2131351028, %v1662
  %v1672 = vshrl.u32 2102212464, %v1663
  %v1673 = vor.u32 %v1671, %v1672
  %v1674 = vshll.u32 2102212464, %v1662
  %v1675 = vshrl.u32 920167782, %v1663
  %v1676 = vor.u32 %v1674, %v1675
  %v1677 = vshll.u32 920167782, %v1662
  %v1678 = vshrl.u32 1326507024, %v1663
  %v1679 = vor.u32 %v1677, %v1678
  %vm1680 = vcmp.lt.s32.totalorder %v1661, 1
  %vm1681 = vcmp.lt.s32.totalorder %v1661, 2
  %vm1682 = vcmp.lt.s32.totalorder %v1661, 3
  %vm1683 = vcmp.lt.s32.totalorder %v1661, 4
  %v1684 = vsel %vm1680, %v1664, %v1667
  %v1685 = vsel %vm1683, %v1673, 2102212464
  %v1686 = vsel %vm1682, %v1670, %v1685
  %v1687 = vsel %vm1681, %v1684, %v1686
  %v1688 = vsel %vm1680, %v1667, %v1670
  %v1689 = vsel %vm1683, %v1676, 920167782
  %v1690 = vsel %vm1682, %v1673, %v1689
  %v1691 = vsel %vm1681, %v1688, %v1690
  %v1692 = vsel %vm1680, %v1670, %v1673
  %v1693 = vsel %vm1683, %v1679, 1326507024
  %v1694 = vsel %vm1682, %v1676, %v1693
  %v1695 = vsel %vm1681, %v1692, %v1694
  %v1696 = vshll.u32 %v1656, 8
  %v1697 = vmul.u32.u64.compose %v1696, %v1695
  %v1698 = vextract.low.u32 %v1697
  %v1699 = vextract.high.u32 %v1697
  %v1700 = vmul.u32.u64.compose %v1696, %v1691
  %v1701 = vextract.low.u32 %v1700
  %v1702 = vextract.high.u32 %v1700
  %v1703 = vmul.u32 %v1696, %v1687
  %v1704 = vadd.s32 %v1699, %v1701
  %vm1705 = vc.u32 %v1699, %v1701
  %v1706 = vadd.s32 %v1702, 1
  %v1707 = vsel %vm1705, %v1706, %v1702
  %v1708 = vadd.s32 %v1703, %v1707
  %v1709 = vadd.s32 %v1708, 536870912
  %v1710 = vshrl.u32 %v1709, 30
  %v1711 = vshll.u32 %v1710, 30
  %v1712 = vsub.s32 %v1708, %v1711
  %vm1713 = vcmp.lt.s32.totalorder %v1712, 0
  %v1714 = vsub.s32 0, %v1712
  %v1715 = vsel %vm1713, %v1714, %v1712
  %v1716 = vclz %v1715
  %v1717 = vsub.s32 %v1716, 2
  %vm1718 = vcmp.gt.s32.totalorder 0, %v1717
  %v1719 = vsel %vm1718, 0, %v1717
  %v1720 = vsub.s32 32, %v1719
  %v1721 = vshll.u32 %v1712, %v1719
  %v1722 = vshrl.u32 %v1704, %v1720
  %v1723 = vor.u32 %v1721, %v1722
  %v1724 = vsub.s32 4294967266, %v1719
  %v1725 = vadd.s32 %v1724, 127
  %v1726 = vshll.u32 %v1725, 23
  %v1727 = vor.u32 4788187, %v1726
  %v1728 = vand.u32 2147483647, %v1727
  %v1730 = vcvt.s32.f32 %v1723
  %v1731 = vmul.f32 %v1730, %v1728
  %v1732 = vxor.u32 %v1731, 2147483648
  %v1733 = vsel %vm1650, %v1732, %v1731
  %v1734 = vsub.s32 4, %v1710
  %v1735 = vsel %vm1650, %v1734, %v1710
  %v1736 = vsel %vm1649, %v1120, %v1733
  %v1737 = vsel %vm1649, 0, %v1735
  %v1738 = vcosq.f32.pop %v1736
  %v1739 = vsinq.f32.pop %v1736
  %vm1740 = vweird.f32 %v1120
  %v1741 = vadd.s32 %v1737, 3
  %v1742 = vand.u32 %v1741, 3
  %vm1743 = vcmp.lt.s32.totalorder %v1742, 2
  %vm1744 = vcmp.eq.s32.totalorder %v1742, 0
  %v1745 = vxor.u32 %v1739, 2147483648
  %v1746 = vsel %vm1744, %v1738, %v1745
  %vm1747 = vcmp.eq.s32.totalorder %v1742, 2
  %v1748 = vxor.u32 %v1738, 2147483648
  %v1749 = vsel %vm1747, %v1748, %v1739
  %v1750 = vsel %vm1743, %v1746, %v1749
  %v1751 = vsel %vm1740, nan, %v1750
  %v1752 = vand.u32 2147483647, %v1124
  %vm1753 = vcmp.le.f32.partialorder %v1752, 0.7853982
  %vm1754 = vcmp.lt.s32.totalorder %v1124, 0
  %v1755 = vand.u32 %v1124, 2139095040
  %v1756 = vshrl.u32 %v1755, 23
  %v1757 = vsub.s32 %v1756, 127
  %v1758 = vand.u32 2147483647, %v1124
  %v1759 = vand.u32 %v1758, 8388607
  %v1760 = vor.u32 %v1759, 8388608
  %v1761 = vsub.s32 0, %v1760
  %v1762 = vadd.s32 %v1757, 1
  %vm1763 = vcmp.gt.s32.totalorder %v1762, 0
  %v1764 = vsel %vm1763, %v1762, 0
  %v1765 = vshrl.u32 %v1764, 5
  %v1766 = vand.u32 %v1764, 31
  %v1767 = vsub.s32 32, %v1766
  %v1768 = vshrl.u32 683565275, %v1767
  %v1769 = vshll.u32 683565275, %v1766
  %v1770 = vshrl.u32 2475754826, %v1767
  %v1771 = vor.u32 %v1769, %v1770
  %v1772 = vshll.u32 2475754826, %v1766
  %v1773 = vshrl.u32 2131351028, %v1767
  %v1774 = vor.u32 %v1772, %v1773
  %v1775 = vshll.u32 2131351028, %v1766
  %v1776 = vshrl.u32 2102212464, %v1767
  %v1777 = vor.u32 %v1775, %v1776
  %v1778 = vshll.u32 2102212464, %v1766
  %v1779 = vshrl.u32 920167782, %v1767
  %v1780 = vor.u32 %v1778, %v1779
  %v1781 = vshll.u32 920167782, %v1766
  %v1782 = vshrl.u32 1326507024, %v1767
  %v1783 = vor.u32 %v1781, %v1782
  %vm1784 = vcmp.lt.s32.totalorder %v1765, 1
  %vm1785 = vcmp.lt.s32.totalorder %v1765, 2
  %vm1786 = vcmp.lt.s32.totalorder %v1765, 3
  %vm1787 = vcmp.lt.s32.totalorder %v1765, 4
  %v1788 = vsel %vm1784, %v1768, %v1771
  %v1789 = vsel %vm1787, %v1777, 2102212464
  %v1790 = vsel %vm1786, %v1774, %v1789
  %v1791 = vsel %vm1785, %v1788, %v1790
  %v1792 = vsel %vm1784, %v1771, %v1774
  %v1793 = vsel %vm1787, %v1780, 920167782
  %v1794 = vsel %vm1786, %v1777, %v1793
  %v1795 = vsel %vm1785, %v1792, %v1794
  %v1796 = vsel %vm1784, %v1774, %v1777
  %v1797 = vsel %vm1787, %v1783, 1326507024
  %v1798 = vsel %vm1786, %v1780, %v1797
  %v1799 = vsel %vm1785, %v1796, %v1798
  %v1800 = vshll.u32 %v1760, 8
  %v1801 = vmul.u32.u64.compose %v1800, %v1799
  %v1802 = vextract.low.u32 %v1801
  %v1803 = vextract.high.u32 %v1801
  %v1804 = vmul.u32.u64.compose %v1800, %v1795
  %v1805 = vextract.low.u32 %v1804
  %v1806 = vextract.high.u32 %v1804
  %v1807 = vmul.u32 %v1800, %v1791
  %v1808 = vadd.s32 %v1803, %v1805
  %vm1809 = vc.u32 %v1803, %v1805
  %v1810 = vadd.s32 %v1806, 1
  %v1811 = vsel %vm1809, %v1810, %v1806
  %v1812 = vadd.s32 %v1807, %v1811
  %v1813 = vadd.s32 %v1812, 536870912
  %v1814 = vshrl.u32 %v1813, 30
  %v1815 = vshll.u32 %v1814, 30
  %v1816 = vsub.s32 %v1812, %v1815
  %vm1817 = vcmp.lt.s32.totalorder %v1816, 0
  %v1818 = vsub.s32 0, %v1816
  %v1819 = vsel %vm1817, %v1818, %v1816
  %v1820 = vclz %v1819
  %v1821 = vsub.s32 %v1820, 2
  %vm1822 = vcmp.gt.s32.totalorder 0, %v1821
  %v1823 = vsel %vm1822, 0, %v1821
  %v1824 = vsub.s32 32, %v1823
  %v1825 = vshll.u32 %v1816, %v1823
  %v1826 = vshrl.u32 %v1808, %v1824
  %v1827 = vor.u32 %v1825, %v1826
  %v1828 = vsub.s32 4294967266, %v1823
  %v1829 = vadd.s32 %v1828, 127
  %v1830 = vshll.u32 %v1829, 23
  %v1831 = vor.u32 4788187, %v1830
  %v1832 = vand.u32 2147483647, %v1831
  %v1834 = vcvt.s32.f32 %v1827
  %v1835 = vmul.f32 %v1834, %v1832
  %v1836 = vxor.u32 %v1835, 2147483648
  %v1837 = vsel %vm1754, %v1836, %v1835
  %v1838 = vsub.s32 4, %v1814
  %v1839 = vsel %vm1754, %v1838, %v1814
  %v1840 = vsel %vm1753, %v1124, %v1837
  %v1841 = vsel %vm1753, 0, %v1839
  %v1842 = vcosq.f32.pop %v1840
  %v1843 = vsinq.f32.pop %v1840
  %vm1844 = vweird.f32 %v1124
  %v1845 = vadd.s32 %v1841, 3
  %v1846 = vand.u32 %v1845, 3
  %vm1847 = vcmp.lt.s32.totalorder %v1846, 2
  %vm1848 = vcmp.eq.s32.totalorder %v1846, 0
  %v1849 = vxor.u32 %v1843, 2147483648
  %v1850 = vsel %vm1848, %v1842, %v1849
  %vm1851 = vcmp.eq.s32.totalorder %v1846, 2
  %v1852 = vxor.u32 %v1842, 2147483648
  %v1853 = vsel %vm1851, %v1852, %v1843
  %v1854 = vsel %vm1847, %v1850, %v1853
  %v1855 = vsel %vm1844, nan, %v1854
  %v1856 = vand.u32 2147483647, %v1126
  %vm1857 = vcmp.le.f32.partialorder %v1856, 0.7853982
  %vm1858 = vcmp.lt.s32.totalorder %v1126, 0
  %v1859 = vand.u32 %v1126, 2139095040
  %v1860 = vshrl.u32 %v1859, 23
  %v1861 = vsub.s32 %v1860, 127
  %v1862 = vand.u32 2147483647, %v1126
  %v1863 = vand.u32 %v1862, 8388607
  %v1864 = vor.u32 %v1863, 8388608
  %v1865 = vsub.s32 0, %v1864
  %v1866 = vadd.s32 %v1861, 1
  %vm1867 = vcmp.gt.s32.totalorder %v1866, 0
  %v1868 = vsel %vm1867, %v1866, 0
  %v1869 = vshrl.u32 %v1868, 5
  %v1870 = vand.u32 %v1868, 31
  %v1871 = vsub.s32 32, %v1870
  %v1872 = vshrl.u32 683565275, %v1871
  %v1873 = vshll.u32 683565275, %v1870
  %v1874 = vshrl.u32 2475754826, %v1871
  %v1875 = vor.u32 %v1873, %v1874
  %v1876 = vshll.u32 2475754826, %v1870
  %v1877 = vshrl.u32 2131351028, %v1871
  %v1878 = vor.u32 %v1876, %v1877
  %v1879 = vshll.u32 2131351028, %v1870
  %v1880 = vshrl.u32 2102212464, %v1871
  %v1881 = vor.u32 %v1879, %v1880
  %v1882 = vshll.u32 2102212464, %v1870
  %v1883 = vshrl.u32 920167782, %v1871
  %v1884 = vor.u32 %v1882, %v1883
  %v1885 = vshll.u32 920167782, %v1870
  %v1886 = vshrl.u32 1326507024, %v1871
  %v1887 = vor.u32 %v1885, %v1886
  %vm1888 = vcmp.lt.s32.totalorder %v1869, 1
  %vm1889 = vcmp.lt.s32.totalorder %v1869, 2
  %vm1890 = vcmp.lt.s32.totalorder %v1869, 3
  %vm1891 = vcmp.lt.s32.totalorder %v1869, 4
  %v1892 = vsel %vm1888, %v1872, %v1875
  %v1893 = vsel %vm1891, %v1881, 2102212464
  %v1894 = vsel %vm1890, %v1878, %v1893
  %v1895 = vsel %vm1889, %v1892, %v1894
  %v1896 = vsel %vm1888, %v1875, %v1878
  %v1897 = vsel %vm1891, %v1884, 920167782
  %v1898 = vsel %vm1890, %v1881, %v1897
  %v1899 = vsel %vm1889, %v1896, %v1898
  %v1900 = vsel %vm1888, %v1878, %v1881
  %v1901 = vsel %vm1891, %v1887, 1326507024
  %v1902 = vsel %vm1890, %v1884, %v1901
  %v1903 = vsel %vm1889, %v1900, %v1902
  %v1904 = vshll.u32 %v1864, 8
  %v1905 = vmul.u32.u64.compose %v1904, %v1903
  %v1906 = vextract.low.u32 %v1905
  %v1907 = vextract.high.u32 %v1905
  %v1908 = vmul.u32.u64.compose %v1904, %v1899
  %v1909 = vextract.low.u32 %v1908
  %v1910 = vextract.high.u32 %v1908
  %v1911 = vmul.u32 %v1904, %v1895
  %v1912 = vadd.s32 %v1907, %v1909
  %vm1913 = vc.u32 %v1907, %v1909
  %v1914 = vadd.s32 %v1910, 1
  %v1915 = vsel %vm1913, %v1914, %v1910
  %v1916 = vadd.s32 %v1911, %v1915
  %v1917 = vadd.s32 %v1916, 536870912
  %v1918 = vshrl.u32 %v1917, 30
  %v1919 = vshll.u32 %v1918, 30
  %v1920 = vsub.s32 %v1916, %v1919
  %vm1921 = vcmp.lt.s32.totalorder %v1920, 0
  %v1922 = vsub.s32 0, %v1920
  %v1923 = vsel %vm1921, %v1922, %v1920
  %v1924 = vclz %v1923
  %v1925 = vsub.s32 %v1924, 2
  %vm1926 = vcmp.gt.s32.totalorder 0, %v1925
  %v1927 = vsel %vm1926, 0, %v1925
  %v1928 = vsub.s32 32, %v1927
  %v1929 = vshll.u32 %v1920, %v1927
  %v1930 = vshrl.u32 %v1912, %v1928
  %v1931 = vor.u32 %v1929, %v1930
  %v1932 = vsub.s32 4294967266, %v1927
  %v1933 = vadd.s32 %v1932, 127
  %v1934 = vshll.u32 %v1933, 23
  %v1935 = vor.u32 4788187, %v1934
  %v1936 = vand.u32 2147483647, %v1935
  %v1938 = vcvt.s32.f32 %v1931
  %v1939 = vmul.f32 %v1938, %v1936
  %v1940 = vxor.u32 %v1939, 2147483648
  %v1941 = vsel %vm1858, %v1940, %v1939
  %v1942 = vsub.s32 4, %v1918
  %v1943 = vsel %vm1858, %v1942, %v1918
  %v1944 = vsel %vm1857, %v1126, %v1941
  %v1945 = vsel %vm1857, 0, %v1943
  %v1946 = vcosq.f32.pop %v1944
  %v1947 = vsinq.f32.pop %v1944
  %vm1948 = vweird.f32 %v1126
  %v1949 = vadd.s32 %v1945, 3
  %v1950 = vand.u32 %v1949, 3
  %vm1951 = vcmp.lt.s32.totalorder %v1950, 2
  %vm1952 = vcmp.eq.s32.totalorder %v1950, 0
  %v1953 = vxor.u32 %v1947, 2147483648
  %v1954 = vsel %vm1952, %v1946, %v1953
  %vm1955 = vcmp.eq.s32.totalorder %v1950, 2
  %v1956 = vxor.u32 %v1946, 2147483648
  %v1957 = vsel %vm1955, %v1956, %v1947
  %v1958 = vsel %vm1951, %v1954, %v1957
  %v1959 = vsel %vm1948, nan, %v1958
  %v1960 = vld [vmem:[%s6] sm:$0x1]
  %v1962 = vsel %vm1026, %v1960, 0
  %1964 = vmatprep.subr.mxu0 %v1335
  %1965 = vmatpush1.msra.mxu0 %v1231
  %1966 = vmatprep.subr.mxu0 %v1543
  %1967 = vmatpush1.msra.mxu0 %v1439
  %1968 = vmatprep.subr.mxu0 %v1751
  %1969 = vmatpush1.msra.mxu0 %v1647
  %1970 = vmatprep.subr.mxu0 %v1959
  %1971 = vmatpush1.msra.mxu0 %v1855
  %1972 = vmatprep.subr.mxu0 0.0
  %1973 = vmatpush1.msra.mxu0 0.0
  %1974 = vmatprep.subr.mxu0 0.0
  %1975 = vmatpush1.msra.mxu0 0.0
  %1976 = vmatprep.subr.mxu0 0.0
  %1977 = vmatpush1.msra.mxu0 0.0
  %1978 = vmatprep.subr.mxu0 0.0
  %1979 = vmatpush1.msra.mxu0 0.0
  %1980 = vmatprep.subr.mxu0 0.0
  %1981 = vmatpush1.msra.mxu0 0.0
  %1982 = vmatprep.subr.mxu0 0.0
  %1983 = vmatpush1.msra.mxu0 0.0
  %1984 = vmatprep.subr.mxu0 0.0
  %1985 = vmatpush1.msra.mxu0 0.0
  %1986 = vmatprep.subr.mxu0 0.0
  %1987 = vmatpush1.msra.mxu0 0.0
  %1988 = vmatprep.subr.mxu0 0.0
  %1989 = vmatpush1.msra.mxu0 0.0
  %1990 = vmatprep.subr.mxu0 0.0
  %1991 = vmatpush1.msra.mxu0 0.0
  %1992 = vmatprep.subr.mxu0 0.0
  %1993 = vmatpush1.msra.mxu0 0.0
  %1994 = vmatprep.subr.mxu0 0.0
  %1995 = vmatpush1.msra.mxu0 0.0
  %1996 = vmatprep.subr.mxu0 0.0
  %1997 = vmatpush1.msra.mxu0 0.0
  %1998 = vmatprep.subr.mxu0 0.0
  %1999 = vmatpush1.msra.mxu0 0.0
  %2000 = vmatprep.subr.mxu0 0.0
  %2001 = vmatpush1.msra.mxu0 0.0
  %2002 = vmatprep.subr.mxu0 0.0
  %2003 = vmatpush1.msra.mxu0 0.0
  %2004 = vmatprep.subr.mxu0 0.0
  %2005 = vmatpush1.msra.mxu0 0.0
  %2006 = vmatprep.subr.mxu0 0.0
  %2007 = vmatpush1.msra.mxu0 0.0
  %2008 = vmatprep.subr.mxu0 0.0
  %2009 = vmatpush1.msra.mxu0 0.0
  %2010 = vmatprep.subr.mxu0 0.0
  %2011 = vmatpush1.msra.mxu0 0.0
  %2012 = vmatprep.subr.mxu0 0.0
  %2013 = vmatpush1.msra.mxu0 0.0
  %2014 = vmatprep.subr.mxu0 0.0
  %2015 = vmatpush1.msra.mxu0 0.0
  %2016 = vmatprep.subr.mxu0 0.0
  %2017 = vmatpush1.msra.mxu0 0.0
  %2018 = vmatprep.subr.mxu0 0.0
  %2019 = vmatpush1.msra.mxu0 0.0
  %2020 = vmatprep.subr.mxu0 0.0
  %2021 = vmatpush1.msra.mxu0 0.0
  %2022 = vmatprep.subr.mxu0 0.0
  %2023 = vmatpush1.msra.mxu0 0.0
  %2024 = vmatprep.subr.mxu0 0.0
  %2025 = vmatpush1.msra.mxu0 0.0
  %2026 = vmatprep.subr.mxu0 0.0
  %2027 = vmatpush1.msra.mxu0 0.0
  %2028 = vmatprep.mubr.f32.mxu0 0.0
  %2029 = vmatmul.mubr.f32.gmra.mrb[0].mxu0 %v1962
  %v2030 = vpop.f32.mrb[0].mxu0
  %v2031 = vadd.f32 0.0, %v2030
  %v2032 = vpop.f32.mrb[0].mxu0
  %v2033 = vadd.f32 0.0, %v2032
  %2034 = vdwg.mxu0
  %v2035 = vadd.f32 %v2031, %v2033
  %s2036 = sld [smem:[#allocation2]]
  %v2037 = vstv %s2036
  %v2038 = vadd.f32 %v2035, %v2037
  %2039 = vst [vmem:[%s7] sm:$0x1] %v2038
  // Predicated region
  $region30: #{qnn1_forward.1} parent=0 // pred_check
    _
  $region31: #{qnn1_forward.1} parent=0 // pred_check_branch
    %2041 = sbr.rel (0) target = $region33
  $region32: #{qnn1_forward.1} parent=0 // pred_region
    _
  $region33: #{qnn1_forward.1} parent=0 // pred_fallthru
    _
  // Predicated region
  $region34: #{qnn1_forward.1} parent=0 // pred_check
    _
  $region35: #{qnn1_forward.1} parent=0 // pred_check_branch
    %2043 = sbr.rel (0) target = $region37
  $region36: #{qnn1_forward.1} parent=0 // pred_region
    _
  $region37: #{qnn1_forward.1} parent=0 // pred_fallthru
    _

</llo_original>
